<compile_context>
chip_gen: v7x
topology: tpu7x:2x2x1
jax: 0.10.0
libtpu: 0.0.40
codegen_flags: <defaults>
</compile_context>

<pallas_src>
import math

import jax
import jax.numpy as jnp
from jax.experimental import pallas as pl
from jax.experimental.pallas import tpu as pltpu

LANE = 128  # lane width / MXU-friendly feature multiple


def _round_up(n: int, m: int) -> int:
    return ((n + m - 1) // m) * m


def _epilogue_dtype_for_backend():
    """bf16 epilogue on chips with a bf16 VPU (v6e / v7x), f32 otherwise."""
    try:
        kind = jax.devices()[0].device_kind.lower()
    except Exception:
        return jnp.float32
    if any(old in kind for old in ("v2", "v3", "v4", "v5")):
        return jnp.float32
    return jnp.bfloat16


# ----------------------------------------------------------------------------
# Kernel
# ----------------------------------------------------------------------------
def actor_kernel(x_ref, w1_ref, b1_ref, w2_ref, b2_ref, w3_ref, b3_ref, o_ref):
    # Epilogue compute dtype is carried by the bias dtype:
    #   bf16 on v6e/v7x (halves h1/h2 live intermediate & spill traffic),
    #   f32 on v5e and older.
    ep = b1_ref.dtype

    # Layer 1: MXU matmul (bf16 x bf16 -> f32 acc) + bias + ReLU.
    h1 = jnp.dot(x_ref[...], w1_ref[...], preferred_element_type=jnp.float32)
    h1 = jnp.maximum(h1.astype(ep) + b1_ref[...], 0.0).astype(jnp.bfloat16)

    # Layer 2: MXU matmul + bias + ReLU.
    h2 = jnp.dot(h1, w2_ref[...], preferred_element_type=jnp.float32)
    h2 = jnp.maximum(h2.astype(ep) + b2_ref[...], 0.0).astype(jnp.bfloat16)

    # Layer 3: MXU matmul + bias + tanh (tanh on EUP, f32 accumulator).
    out = jnp.dot(h2, w3_ref[...], preferred_element_type=jnp.float32)
    o_ref[...] = jnp.tanh(out + b3_ref[...]).astype(o_ref.dtype)


# ----------------------------------------------------------------------------
# Parameter init / preparation
# ----------------------------------------------------------------------------
def init_actor_params(key, obs_dim, act_dim, l1=400, l2=300):
    """f32 params mirroring nn.Linear default init U(-1/sqrt(fan_in), +...).

    Weights stored as [in_features, out_features] (transposed vs. PyTorch's
    [out, in]) so the kernel computes plain x @ W + b.
    """
    ks = jax.random.split(key, 6)

    def linear(kw, kb, fan_in, fan_out):
        bound = 1.0 / math.sqrt(fan_in)
        w = jax.random.uniform(kw, (fan_in, fan_out), jnp.float32, -bound, bound)
        b = jax.random.uniform(kb, (1, fan_out), jnp.float32, -bound, bound)
        return w, b

    w1, b1 = linear(ks[0], ks[1], obs_dim, l1)
    w2, b2 = linear(ks[2], ks[3], l1, l2)
    w3, b3 = linear(ks[4], ks[5], l2, act_dim)
    return {"w1": w1, "b1": b1, "w2": w2, "b2": b2, "w3": w3, "b3": b3}


def prepare_actor_params(params, epilogue_dtype=jnp.float32):
    """One-time host-side prep: zero-pad feature dims to multiples of 128,
    cast weights to bf16 and hidden-layer biases to the epilogue dtype.
    Zero-padding is numerically exact through ReLU/tanh (padded biases are
    zero, padded output cols are sliced off)."""
    w1, b1 = params["w1"], params["b1"]
    w2, b2 = params["w2"], params["b2"]
    w3, b3 = params["w3"], params["b3"]

    obs_dim, l1 = w1.shape
    _, l2 = w2.shape
    _, act_dim = w3.shape

    l1p = _round_up(l1, LANE)
    l2p = _round_up(l2, LANE)
    act_p = _round_up(act_dim, LANE)

    def pad2(a, r, c):
        return jnp.pad(a, ((0, r - a.shape[0]), (0, c - a.shape[1])))

    prepared = {
        "w1": pad2(w1, obs_dim, l1p).astype(jnp.bfloat16),
        "b1": pad2(b1, 1, l1p).astype(epilogue_dtype),
        "w2": pad2(w2, l1p, l2p).astype(jnp.bfloat16),
        "b2": pad2(b2, 1, l2p).astype(epilogue_dtype),
        "w3": pad2(w3, l2p, act_p).astype(jnp.bfloat16),
        "b3": pad2(b3, 1, act_p).astype(jnp.float32),  # last layer: f32 + tanh
    }
    meta = {"obs_dim": obs_dim, "act_dim": act_dim, "act_pad": act_p}
    return prepared, meta


# ----------------------------------------------------------------------------
# Forward wrapper
# ----------------------------------------------------------------------------
def _pick_batch_tile(B: int) -> int:
    """Batch tile: big enough to fill the MXU / amortize grid-step overhead,
    but >= 2 grid steps for B >= 16 so both v7x TensorCores get work."""
    if B < 16:
        return _round_up(B, 8)
    cap = 512 if B >= 2048 else 256
    return min(cap, _round_up((B + 1) // 2, 8))


def actor_forward(x, prepared, meta, *, out_dtype=jnp.float32):
    """x: [B, obs_dim] f32; prepared: padded params; returns [B, act_dim]."""
    w1, b1 = prepared["w1"], prepared["b1"]
    w2, b2 = prepared["w2"], prepared["b2"]
    w3, b3 = prepared["w3"], prepared["b3"]

    B, obs_dim = x.shape
    act_dim = meta["act_dim"]
    act_p = meta["act_pad"]

    tb = _pick_batch_tile(B)
    b_pad = _round_up(B, tb)

    # Cast x to the MXU-native dtype once in the wrapper (halves its DMA).
    x = x.astype(jnp.bfloat16)
    if b_pad != B:
        x = jnp.pad(x, ((0, b_pad - B), (0, 0)))
    grid = (b_pad // tb,)

    def run(single_buffer_weights: bool):
        if single_buffer_weights:
            # Constant index maps -> weights stay resident; single-buffer them
            # so VMEM isn't wasted on a useless second copy.
            resident = lambda shape: pl.BlockSpec(
                shape, lambda i: (0,) * len(shape), pipeline_mode=pl.Buffered(1))
        else:
            resident = lambda shape: pl.BlockSpec(
                shape, lambda i: (0,) * len(shape))

        return pl.pallas_call(
            actor_kernel,
            out_shape=jax.ShapeDtypeStruct((b_pad, act_p), out_dtype),
            grid=grid,
            in_specs=[
                pl.BlockSpec((tb, obs_dim), lambda i: (i, 0)),   # x, batch-blocked
                resident(w1.shape), resident(b1.shape),
                resident(w2.shape), resident(b2.shape),
                resident(w3.shape), resident(b3.shape),
            ],
            out_specs=pl.BlockSpec((tb, act_p), lambda i: (i, 0)),
            compiler_params=pltpu.CompilerParams(
                dimension_semantics=("parallel",),
                vmem_limit_bytes=16 << 20,
            ),
        )(x, w1, b1, w2, b2, w3, b3)

    try:
        out = run(single_buffer_weights=True)
    except Exception:
        # Fallback if this jax build rejects pl.Buffered(1) single-buffering.
        out = run(single_buffer_weights=False)

    # Slice off batch padding and padded (tanh(0)=0) action columns.
    return out[:B, :act_dim]


# ----------------------------------------------------------------------------
# Pure-JAX references
# ----------------------------------------------------------------------------
def actor_reference_quantized(x, prepared, meta):
    """Replicates the kernel math exactly (bf16 weights, epilogue dtype)."""
    ep = prepared["b1"].dtype
    h = x.astype(jnp.bfloat16)
    h = jnp.dot(h, prepared["w1"], preferred_element_type=jnp.float32)
    h = jnp.maximum(h.astype(ep) + prepared["b1"], 0.0).astype(jnp.bfloat16)
    h = jnp.dot(h, prepared["w2"], preferred_element_type=jnp.float32)
    h = jnp.maximum(h.astype(ep) + prepared["b2"], 0.0).astype(jnp.bfloat16)
    h = jnp.dot(h, prepared["w3"], preferred_element_type=jnp.float32)
    h = jnp.tanh(h + prepared["b3"])
    return h[:, : meta["act_dim"]]


def actor_reference_f32(x, params):
    """PyTorch-equivalent full-f32 forward."""
    h = jnp.maximum(x @ params["w1"] + params["b1"], 0.0)
    h = jnp.maximum(h @ params["w2"] + params["b2"], 0.0)
    return jnp.tanh(h @ params["w3"] + params["b3"])


# ----------------------------------------------------------------------------
# Demo / self-check
# ----------------------------------------------------------------------------
if __name__ == "__main__":
    key = jax.random.PRNGKey(0)
    k_params, k_x = jax.random.split(key)

    batch = 8
    obs_dim = 16       # observation_space_dim
    act_dim = 4        # action_space_dim
    layer_1_dim = 400
    layer_2_dim = 300

    epilogue_dtype = _epilogue_dtype_for_backend()

    params = init_actor_params(k_params, obs_dim, act_dim, layer_1_dim, layer_2_dim)
    prepared, meta = prepare_actor_params(params, epilogue_dtype)
    x = jax.random.normal(k_x, (batch, obs_dim), dtype=jnp.float32)

    out = actor_forward(x, prepared, meta)
    out = jax.block_until_ready(out)
    assert out.shape == (batch, act_dim)

    # Reference 1: exact replica of the kernel's quantized math (tight tol).
    ref_q = actor_reference_quantized(x, prepared, meta)
    assert jnp.allclose(out, ref_q, atol=1e-2, rtol=1e-2)

    # Reference 2: full f32 (PyTorch-equivalent) weights; loose tolerance for
    # the deliberate bf16 weight/activation approximation.
    ref32 = actor_reference_f32(x, params)
    assert jnp.allclose(out, ref32, atol=5e-2, rtol=5e-2)

    assert bool(jnp.all(jnp.abs(out) <= 1.0))

    print("KERNEL_OK")
</pallas_src>

<mosaic_0001>
module attributes {stable_mosaic.version = 11 : i64} {
  func.func @actor_kernel(%arg0: i32, %arg1: memref<8x16xbf16, #tpu.memory_space<vmem>>, %arg2: memref<16x512xbf16, #tpu.memory_space<vmem>>, %arg3: memref<1x512xbf16, #tpu.memory_space<vmem>>, %arg4: memref<512x384xbf16, #tpu.memory_space<vmem>>, %arg5: memref<1x384xbf16, #tpu.memory_space<vmem>>, %arg6: memref<384x128xbf16, #tpu.memory_space<vmem>>, %arg7: memref<1x128xf32, #tpu.memory_space<vmem>>, %arg8: memref<8x128xf32, #tpu.memory_space<vmem>>) attributes {dimension_semantics = [#tpu.dimension_semantics<parallel>], iteration_bounds = array<i64: 1>, scalar_prefetch = 0 : i64, scratch_operands = 0 : i64, tpu.core_type = #tpu.core_type<tc>, window_params = [{transform_indices = @transform_0, window_bounds = array<i64: 8, 16>}, {pipeline_mode = #tpu.pipeline_mode<synchronous>, transform_indices = @transform_1, window_bounds = array<i64: 16, 512>}, {pipeline_mode = #tpu.pipeline_mode<synchronous>, transform_indices = @transform_2, window_bounds = array<i64: 1, 512>}, {pipeline_mode = #tpu.pipeline_mode<synchronous>, transform_indices = @transform_3, window_bounds = array<i64: 512, 384>}, {pipeline_mode = #tpu.pipeline_mode<synchronous>, transform_indices = @transform_4, window_bounds = array<i64: 1, 384>}, {pipeline_mode = #tpu.pipeline_mode<synchronous>, transform_indices = @transform_5, window_bounds = array<i64: 384, 128>}, {pipeline_mode = #tpu.pipeline_mode<synchronous>, transform_indices = @transform_6, window_bounds = array<i64: 1, 128>}, {transform_indices = @transform_7, window_bounds = array<i64: 8, 128>}]} {
    %c0 = arith.constant 0 : index
    %c0_0 = arith.constant 0 : index
    %0 = vector.load %arg1[%c0, %c0_0] : memref<8x16xbf16, #tpu.memory_space<vmem>>, vector<8x16xbf16>
    %c0_1 = arith.constant 0 : index
    %c0_2 = arith.constant 0 : index
    %1 = vector.load %arg2[%c0_1, %c0_2] : memref<16x512xbf16, #tpu.memory_space<vmem>>, vector<16x512xbf16>
    %cst = arith.constant dense<0.000000e+00> : vector<8x512xf32>
    %2 = tpu.matmul %0, %1, %cst {dimension_numbers = #tpu.dot_dimension_numbers<[1], [0], [0], [1], [0, 0, 1, 1], [], []>} : vector<8x16xbf16>, vector<16x512xbf16>, vector<8x512xf32> -> vector<8x512xf32>
    %3 = arith.truncf %2 : vector<8x512xf32> to vector<8x512xbf16>
    %c0_3 = arith.constant 0 : index
    %c0_4 = arith.constant 0 : index
    %4 = vector.load %arg3[%c0_3, %c0_4] : memref<1x512xbf16, #tpu.memory_space<vmem>>, vector<1x512xbf16>
    %5 = vector.broadcast %4 : vector<1x512xbf16> to vector<8x512xbf16>
    %6 = arith.addf %3, %5 : vector<8x512xbf16>
    %cst_5 = arith.constant 0.000000e+00 : bf16
    %7 = vector.broadcast %cst_5 : bf16 to vector<8x512xbf16>
    %8 = arith.maximumf %6, %7 : vector<8x512xbf16>
    %c0_6 = arith.constant 0 : index
    %c0_7 = arith.constant 0 : index
    %9 = vector.load %arg4[%c0_6, %c0_7] : memref<512x384xbf16, #tpu.memory_space<vmem>>, vector<512x384xbf16>
    %cst_8 = arith.constant dense<0.000000e+00> : vector<8x384xf32>
    %10 = tpu.matmul %8, %9, %cst_8 {dimension_numbers = #tpu.dot_dimension_numbers<[1], [0], [0], [1], [0, 0, 1, 1], [], []>} : vector<8x512xbf16>, vector<512x384xbf16>, vector<8x384xf32> -> vector<8x384xf32>
    %11 = arith.truncf %10 : vector<8x384xf32> to vector<8x384xbf16>
    %c0_9 = arith.constant 0 : index
    %c0_10 = arith.constant 0 : index
    %12 = vector.load %arg5[%c0_9, %c0_10] : memref<1x384xbf16, #tpu.memory_space<vmem>>, vector<1x384xbf16>
    %13 = vector.broadcast %12 : vector<1x384xbf16> to vector<8x384xbf16>
    %14 = arith.addf %11, %13 : vector<8x384xbf16>
    %cst_11 = arith.constant 0.000000e+00 : bf16
    %15 = vector.broadcast %cst_11 : bf16 to vector<8x384xbf16>
    %16 = arith.maximumf %14, %15 : vector<8x384xbf16>
    %c0_12 = arith.constant 0 : index
    %c0_13 = arith.constant 0 : index
    %17 = vector.load %arg6[%c0_12, %c0_13] : memref<384x128xbf16, #tpu.memory_space<vmem>>, vector<384x128xbf16>
    %cst_14 = arith.constant dense<0.000000e+00> : vector<8x128xf32>
    %18 = tpu.matmul %16, %17, %cst_14 {dimension_numbers = #tpu.dot_dimension_numbers<[1], [0], [0], [1], [0, 0, 1, 1], [], []>} : vector<8x384xbf16>, vector<384x128xbf16>, vector<8x128xf32> -> vector<8x128xf32>
    %c0_15 = arith.constant 0 : index
    %c0_16 = arith.constant 0 : index
    %19 = vector.load %arg7[%c0_15, %c0_16] : memref<1x128xf32, #tpu.memory_space<vmem>>, vector<1x128xf32>
    %20 = vector.broadcast %19 : vector<1x128xf32> to vector<8x128xf32>
    %21 = arith.addf %18, %20 : vector<8x128xf32>
    %22 = math.tanh %21 : vector<8x128xf32>
    %c0_17 = arith.constant 0 : index
    %c0_18 = arith.constant 0 : index
    %23 = vector.load %arg8[%c0_17, %c0_18] : memref<8x128xf32, #tpu.memory_space<vmem>>, vector<8x128xf32>
    tpu.vector_store %arg8[%c0_17, %c0_18], %22 {strides = array<i32>} : memref<8x128xf32, #tpu.memory_space<vmem>>, vector<8x128xf32>,
    return
  }
  func.func @transform_0(%arg0: i32) -> (i32, i32) {
    %c0_i32 = arith.constant 0 : i32
    %c0_i32_0 = arith.constant 0 : i32
    return %arg0, %c0_i32 : i32, i32
  }
  func.func @transform_1(%arg0: i32) -> (i32, i32) {
    %c0_i32 = arith.constant 0 : i32
    %c0_i32_0 = arith.constant 0 : i32
    %c0_i32_1 = arith.constant 0 : i32
    return %c0_i32, %c0_i32_0 : i32, i32
  }
  func.func @transform_2(%arg0: i32) -> (i32, i32) {
    %c0_i32 = arith.constant 0 : i32
    %c0_i32_0 = arith.constant 0 : i32
    %c0_i32_1 = arith.constant 0 : i32
    return %c0_i32, %c0_i32_0 : i32, i32
  }
  func.func @transform_3(%arg0: i32) -> (i32, i32) {
    %c0_i32 = arith.constant 0 : i32
    %c0_i32_0 = arith.constant 0 : i32
    %c0_i32_1 = arith.constant 0 : i32
    return %c0_i32, %c0_i32_0 : i32, i32
  }
  func.func @transform_4(%arg0: i32) -> (i32, i32) {
    %c0_i32 = arith.constant 0 : i32
    %c0_i32_0 = arith.constant 0 : i32
    %c0_i32_1 = arith.constant 0 : i32
    return %c0_i32, %c0_i32_0 : i32, i32
  }
  func.func @transform_5(%arg0: i32) -> (i32, i32) {
    %c0_i32 = arith.constant 0 : i32
    %c0_i32_0 = arith.constant 0 : i32
    %c0_i32_1 = arith.constant 0 : i32
    return %c0_i32, %c0_i32_0 : i32, i32
  }
  func.func @transform_6(%arg0: i32) -> (i32, i32) {
    %c0_i32 = arith.constant 0 : i32
    %c0_i32_0 = arith.constant 0 : i32
    %c0_i32_1 = arith.constant 0 : i32
    return %c0_i32, %c0_i32_0 : i32, i32
  }
  func.func @transform_7(%arg0: i32) -> (i32, i32) {
    %c0_i32 = arith.constant 0 : i32
    %c0_i32_0 = arith.constant 0 : i32
    return %arg0, %c0_i32 : i32, i32
  }
}

module attributes {stable_mosaic.version = 11 : i64} {
  func.func @actor_kernel(%arg0: i32, %arg1: memref<8x16xbf16, #tpu.memory_space<vmem>>, %arg2: memref<16x512xbf16, #tpu.memory_space<vmem>>, %arg3: memref<1x512xbf16, #tpu.memory_space<vmem>>, %arg4: memref<512x384xbf16, #tpu.memory_space<vmem>>, %arg5: memref<1x384xbf16, #tpu.memory_space<vmem>>, %arg6: memref<384x128xbf16, #tpu.memory_space<vmem>>, %arg7: memref<1x128xf32, #tpu.memory_space<vmem>>, %arg8: memref<8x128xf32, #tpu.memory_space<vmem>>) attributes {dimension_semantics = [#tpu.dimension_semantics<parallel>], iteration_bounds = array<i64: 1>, scalar_prefetch = 0 : i64, scratch_operands = 0 : i64, tpu.core_type = #tpu.core_type<tc>, window_params = [{transform_indices = @transform_0, window_bounds = array<i64: 8, 16>}, {pipeline_mode = #tpu.pipeline_mode<synchronous>, transform_indices = @transform_1, window_bounds = array<i64: 16, 512>}, {pipeline_mode = #tpu.pipeline_mode<synchronous>, transform_indices = @transform_2, window_bounds = array<i64: 1, 512>}, {pipeline_mode = #tpu.pipeline_mode<synchronous>, transform_indices = @transform_3, window_bounds = array<i64: 512, 384>}, {pipeline_mode = #tpu.pipeline_mode<synchronous>, transform_indices = @transform_4, window_bounds = array<i64: 1, 384>}, {pipeline_mode = #tpu.pipeline_mode<synchronous>, transform_indices = @transform_5, window_bounds = array<i64: 384, 128>}, {pipeline_mode = #tpu.pipeline_mode<synchronous>, transform_indices = @transform_6, window_bounds = array<i64: 1, 128>}, {transform_indices = @transform_7, window_bounds = array<i64: 8, 128>}]} {
    %c0 = arith.constant 0 : index
    %c0_0 = arith.constant 0 : index
    %0 = vector.load %arg1[%c0, %c0_0] : memref<8x16xbf16, #tpu.memory_space<vmem>>, vector<8x16xbf16>
    %c0_1 = arith.constant 0 : index
    %c0_2 = arith.constant 0 : index
    %1 = vector.load %arg2[%c0_1, %c0_2] : memref<16x512xbf16, #tpu.memory_space<vmem>>, vector<16x512xbf16>
    %cst = arith.constant dense<0.000000e+00> : vector<8x512xf32>
    %2 = tpu.matmul %0, %1, %cst {dimension_numbers = #tpu.dot_dimension_numbers<[1], [0], [0], [1], [0, 0, 1, 1], [], []>} : vector<8x16xbf16>, vector<16x512xbf16>, vector<8x512xf32> -> vector<8x512xf32>
    %3 = arith.truncf %2 : vector<8x512xf32> to vector<8x512xbf16>
    %c0_3 = arith.constant 0 : index
    %c0_4 = arith.constant 0 : index
    %4 = vector.load %arg3[%c0_3, %c0_4] : memref<1x512xbf16, #tpu.memory_space<vmem>>, vector<1x512xbf16>
    %5 = vector.broadcast %4 : vector<1x512xbf16> to vector<8x512xbf16>
    %6 = arith.addf %3, %5 : vector<8x512xbf16>
    %cst_5 = arith.constant 0.000000e+00 : bf16
    %7 = vector.broadcast %cst_5 : bf16 to vector<8x512xbf16>
    %8 = arith.maximumf %6, %7 : vector<8x512xbf16>
    %c0_6 = arith.constant 0 : index
    %c0_7 = arith.constant 0 : index
    %9 = vector.load %arg4[%c0_6, %c0_7] : memref<512x384xbf16, #tpu.memory_space<vmem>>, vector<512x384xbf16>
    %cst_8 = arith.constant dense<0.000000e+00> : vector<8x384xf32>
    %10 = tpu.matmul %8, %9, %cst_8 {dimension_numbers = #tpu.dot_dimension_numbers<[1], [0], [0], [1], [0, 0, 1, 1], [], []>} : vector<8x512xbf16>, vector<512x384xbf16>, vector<8x384xf32> -> vector<8x384xf32>
    %11 = arith.truncf %10 : vector<8x384xf32> to vector<8x384xbf16>
    %c0_9 = arith.constant 0 : index
    %c0_10 = arith.constant 0 : index
    %12 = vector.load %arg5[%c0_9, %c0_10] : memref<1x384xbf16, #tpu.memory_space<vmem>>, vector<1x384xbf16>
    %13 = vector.broadcast %12 : vector<1x384xbf16> to vector<8x384xbf16>
    %14 = arith.addf %11, %13 : vector<8x384xbf16>
    %cst_11 = arith.constant 0.000000e+00 : bf16
    %15 = vector.broadcast %cst_11 : bf16 to vector<8x384xbf16>
    %16 = arith.maximumf %14, %15 : vector<8x384xbf16>
    %c0_12 = arith.constant 0 : index
    %c0_13 = arith.constant 0 : index
    %17 = vector.load %arg6[%c0_12, %c0_13] : memref<384x128xbf16, #tpu.memory_space<vmem>>, vector<384x128xbf16>
    %cst_14 = arith.constant dense<0.000000e+00> : vector<8x128xf32>
    %18 = tpu.matmul %16, %17, %cst_14 {dimension_numbers = #tpu.dot_dimension_numbers<[1], [0], [0], [1], [0, 0, 1, 1], [], []>} : vector<8x384xbf16>, vector<384x128xbf16>, vector<8x128xf32> -> vector<8x128xf32>
    %c0_15 = arith.constant 0 : index
    %c0_16 = arith.constant 0 : index
    %19 = vector.load %arg7[%c0_15, %c0_16] : memref<1x128xf32, #tpu.memory_space<vmem>>, vector<1x128xf32>
    %20 = vector.broadcast %19 : vector<1x128xf32> to vector<8x128xf32>
    %21 = arith.addf %18, %20 : vector<8x128xf32>
    %22 = math.tanh %21 : vector<8x128xf32>
    %c0_17 = arith.constant 0 : index
    %c0_18 = arith.constant 0 : index
    %23 = vector.load %arg8[%c0_17, %c0_18] : memref<8x128xf32, #tpu.memory_space<vmem>>, vector<8x128xf32>
    tpu.vector_store %arg8[%c0_17, %c0_18], %22 {strides = array<i32>} : memref<8x128xf32, #tpu.memory_space<vmem>>, vector<8x128xf32>,
    return
  }
  func.func @transform_0(%arg0: i32) -> (i32, i32) {
    %c0_i32 = arith.constant 0 : i32
    %c0_i32_0 = arith.constant 0 : i32
    return %arg0, %c0_i32 : i32, i32
  }
  func.func @transform_1(%arg0: i32) -> (i32, i32) {
    %c0_i32 = arith.constant 0 : i32
    %c0_i32_0 = arith.constant 0 : i32
    %c0_i32_1 = arith.constant 0 : i32
    return %c0_i32, %c0_i32_0 : i32, i32
  }
  func.func @transform_2(%arg0: i32) -> (i32, i32) {
    %c0_i32 = arith.constant 0 : i32
    %c0_i32_0 = arith.constant 0 : i32
    %c0_i32_1 = arith.constant 0 : i32
    return %c0_i32, %c0_i32_0 : i32, i32
  }
  func.func @transform_3(%arg0: i32) -> (i32, i32) {
    %c0_i32 = arith.constant 0 : i32
    %c0_i32_0 = arith.constant 0 : i32
    %c0_i32_1 = arith.constant 0 : i32
    return %c0_i32, %c0_i32_0 : i32, i32
  }
  func.func @transform_4(%arg0: i32) -> (i32, i32) {
    %c0_i32 = arith.constant 0 : i32
    %c0_i32_0 = arith.constant 0 : i32
    %c0_i32_1 = arith.constant 0 : i32
    return %c0_i32, %c0_i32_0 : i32, i32
  }
  func.func @transform_5(%arg0: i32) -> (i32, i32) {
    %c0_i32 = arith.constant 0 : i32
    %c0_i32_0 = arith.constant 0 : i32
    %c0_i32_1 = arith.constant 0 : i32
    return %c0_i32, %c0_i32_0 : i32, i32
  }
  func.func @transform_6(%arg0: i32) -> (i32, i32) {
    %c0_i32 = arith.constant 0 : i32
    %c0_i32_0 = arith.constant 0 : i32
    %c0_i32_1 = arith.constant 0 : i32
    return %c0_i32, %c0_i32_0 : i32, i32
  }
  func.func @transform_7(%arg0: i32) -> (i32, i32) {
    %c0_i32 = arith.constant 0 : i32
    %c0_i32_0 = arith.constant 0 : i32
    return %arg0, %c0_i32 : i32, i32
  }
}

</mosaic_0001>

<llo_original>
// kernel: tpu_custom_call.1
$region0: #{tpu_custom_call.1}
  #allocation0 [shape = 'u32[]', space=smem, size = 0x4, offset = 0x4, fixed_abs, tag = 'smem constant byte address 0x4 - core index']
  #allocation1 [shape = 'u32[144,128]{1,0:T(1,128)}', space=vmem, size = 0x12000, scoped, tag = 'internal scratch']
  %s0 = inlined_call_operand.hbm [shape: bf16[8,16], index: 0, kind: input, shape index: {}]
  %s1 = inlined_call_operand.hbm [shape: bf16[16,512], index: 1, kind: input, shape index: {}]
  %s2 = inlined_call_operand.vmem [shape: bf16[1,512], index: 2, kind: input, shape index: {}]
  %s3 = inlined_call_operand.hbm [shape: bf16[512,384], index: 3, kind: input, shape index: {}]
  %s4 = inlined_call_operand.vmem [shape: bf16[1,384], index: 4, kind: input, shape index: {}]
  %s5 = inlined_call_operand.hbm [shape: bf16[384,128], index: 5, kind: input, shape index: {}]
  %s6 = inlined_call_operand.vmem [shape: f32[1,128], index: 6, kind: input, shape index: {}]
  %s7 = inlined_call_operand.hbm [shape: f32[8,128], index: 7, kind: output, shape index: {}]
  %s8 = sld [smem:[#allocation0]]
  $region54: #{tpu_custom_call.1} parent=0
    _
  %s10 = ssub.s32 1, %s8
  %s11 = scalar_select 0, %s10, %s8
  $region1: #{tpu_custom_call.1} parent=0
    #allocation2 [shape = 'u8[2048]{0}', space=vmem, size = 0x800, scoped, tag = 'input window, operand 0, single buffered']
    #allocation3 [shape = 's32[1]{0}', space=sflag, size = 0x4, scoped, tag = 'scoped memory for tpu_custom_call.1']
    #allocation4 [shape = 's32[1]{0}', space=sflag, size = 0x4, scoped, tag = 'scoped memory for tpu_custom_call.1']
    #allocation5 [shape = 'u8[16384]{0}', space=vmem, size = 0x4000, scoped, tag = 'input window, operand 1, single buffered']
    #allocation6 [shape = 's32[1]{0}', space=sflag, size = 0x4, scoped, tag = 'scoped memory for tpu_custom_call.1']
    #allocation7 [shape = 'u8[393216]{0}', space=vmem, size = 0x60000, scoped, tag = 'input window, operand 3, single buffered']
    #allocation8 [shape = 'u8[98304]{0}', space=vmem, size = 0x18000, scoped, tag = 'input window, operand 5, single buffered']
    #allocation9 [shape = 's32[1]{0}', space=sflag, size = 0x4, scoped, tag = 'scoped memory for tpu_custom_call.1']
    #allocation10 [shape = 'u8[4096]{0}', space=vmem, size = 0x1000, scoped, tag = 'output window, operand 0, single buffered']
    %12 = vsyncpa [#allocation3], 0
    %13 = vsyncpa [#allocation6], 0
    %14 = vsyncpa [#allocation9], 0
    %15 = vsyncpa [#allocation4], 0
    // Predicated region
    $region2: #{tpu_custom_call.1} parent=1 // pred_check
      _
    $region3: #{tpu_custom_call.1} parent=1 // pred_check_branch
      %17 = sbr.rel (0) target = $region5
    $region4: #{tpu_custom_call.1} parent=1 // pred_region
      %s19 = ssub.s32 64, 64
      %20 = vsyncadd [#allocation3], %s19
      %s22 = sshll.u32 [#allocation2], 4
      %s23 = int_to_ptr.vmem [resolvable:$true] %s22
      %25 = dma.hbm_to_vmem [thread:$0]  %s0, 64, %s23, [#allocation3]
    $region5: #{tpu_custom_call.1} parent=1 // pred_fallthru
      _
    // Predicated region
    $region6: #{tpu_custom_call.1} parent=1 // pred_check
      _
    $region7: #{tpu_custom_call.1} parent=1 // pred_check_branch
      %27 = sbr.rel (0) target = $region9
    $region8: #{tpu_custom_call.1} parent=1 // pred_region
      %s29 = ssub.s32 512, 512
      %30 = vsyncadd [#allocation6], %s29
      %s31 = sshll.u32 [#allocation5], 4
      %s32 = int_to_ptr.vmem [resolvable:$true] %s31
      %37 = dma.hbm_to_vmem [thread:$0]  %s1, 512, %s32, [#allocation6], 256, 256, 16
    $region9: #{tpu_custom_call.1} parent=1 // pred_fallthru
      _
    // Predicated region
    $region10: #{tpu_custom_call.1} parent=1 // pred_check
      _
    $region11: #{tpu_custom_call.1} parent=1 // pred_check_branch
      %39 = sbr.rel (0) target = $region13
    $region12: #{tpu_custom_call.1} parent=1 // pred_region
      _
    $region13: #{tpu_custom_call.1} parent=1 // pred_fallthru
      _
    // Predicated region
    $region14: #{tpu_custom_call.1} parent=1 // pred_check
      _
    $region15: #{tpu_custom_call.1} parent=1 // pred_check_branch
      %41 = sbr.rel (0) target = $region17
    $region16: #{tpu_custom_call.1} parent=1 // pred_region
      %s43 = ssub.s32 12288, 12288
      %44 = vsyncadd [#allocation6], %s43
      %s45 = sshll.u32 [#allocation7], 4
      %s46 = int_to_ptr.vmem [resolvable:$true] %s45
      %51 = dma.hbm_to_vmem [thread:$0]  %s3, 12288, %s46, [#allocation6], 192, 192, 12
    $region17: #{tpu_custom_call.1} parent=1 // pred_fallthru
      _
    // Predicated region
    $region18: #{tpu_custom_call.1} parent=1 // pred_check
      _
    $region19: #{tpu_custom_call.1} parent=1 // pred_check_branch
      %53 = sbr.rel (0) target = $region21
    $region20: #{tpu_custom_call.1} parent=1 // pred_region
      _
    $region21: #{tpu_custom_call.1} parent=1 // pred_fallthru
      _
    // Predicated region
    $region22: #{tpu_custom_call.1} parent=1 // pred_check
      _
    $region23: #{tpu_custom_call.1} parent=1 // pred_check_branch
      %55 = sbr.rel (0) target = $region25
    $region24: #{tpu_custom_call.1} parent=1 // pred_region
      %s57 = ssub.s32 3072, 3072
      %58 = vsyncadd [#allocation9], %s57
      %s59 = sshll.u32 [#allocation8], 4
      %s60 = int_to_ptr.vmem [resolvable:$true] %s59
      %65 = dma.hbm_to_vmem [thread:$0]  %s5, 3072, %s60, [#allocation9], 64, 64, 4
    $region25: #{tpu_custom_call.1} parent=1 // pred_fallthru
      _
    // Predicated region
    $region26: #{tpu_custom_call.1} parent=1 // pred_check
      _
    $region27: #{tpu_custom_call.1} parent=1 // pred_check_branch
      %67 = sbr.rel (0) target = $region29
    $region28: #{tpu_custom_call.1} parent=1 // pred_region
      _
    $region29: #{tpu_custom_call.1} parent=1 // pred_fallthru
      _
    // Predicated region
    $region30: #{tpu_custom_call.1} parent=1 // pred_check
      _
    $region31: #{tpu_custom_call.1} parent=1 // pred_check_branch
      %69 = sbr.rel (0) target = $region33
    $region32: #{tpu_custom_call.1} parent=1 // pred_region
      %70 = dma.done [#allocation3], 64
    $region33: #{tpu_custom_call.1} parent=1 // pred_fallthru
      _
    // Predicated region
    $region34: #{tpu_custom_call.1} parent=1 // pred_check
      _
    $region35: #{tpu_custom_call.1} parent=1 // pred_check_branch
      %72 = sbr.rel (0) target = $region37
    $region36: #{tpu_custom_call.1} parent=1 // pred_region
      %73 = dma.done [#allocation6], 512
    $region37: #{tpu_custom_call.1} parent=1 // pred_fallthru
      _
    // Predicated region
    $region38: #{tpu_custom_call.1} parent=1 // pred_check
      _
    $region39: #{tpu_custom_call.1} parent=1 // pred_check_branch
      %75 = sbr.rel (0) target = $region41
    $region40: #{tpu_custom_call.1} parent=1 // pred_region
      %76 = dma.done [#allocation6], 12288
    $region41: #{tpu_custom_call.1} parent=1 // pred_fallthru
      _
    // Predicated region
    $region42: #{tpu_custom_call.1} parent=1 // pred_check
      _
    $region43: #{tpu_custom_call.1} parent=1 // pred_check_branch
      %78 = sbr.rel (0) target = $region45
    $region44: #{tpu_custom_call.1} parent=1 // pred_region
      %79 = dma.done [#allocation9], 3072
    $region45: #{tpu_custom_call.1} parent=1 // pred_fallthru
      _
    %v81 = vld [vmem:[#allocation2] sm:$0xf]
    %v82 = vld [vmem:[#allocation5] sm:$0xff]
    %v83 = vld [vmem:[#allocation5 + $0x8] sm:$0xff]
    %v84 = vld [vmem:[#allocation5 + $0x10] sm:$0xff]
    %v85 = vld [vmem:[#allocation5 + $0x18] sm:$0xff]
    %v90 = vunpack.c.l.b16 %v82
    %v91 = vunpack.c.h.b16 %v82
    %v92 = vunpack.c.l.b16 %v83
    %v93 = vunpack.c.h.b16 %v83
    %v94 = vunpack.c.l.b16 %v84
    %v95 = vunpack.c.h.b16 %v84
    %v96 = vunpack.c.l.b16 %v85
    %v97 = vunpack.c.h.b16 %v85
    %v98 = vpack.c.b16 %v94, %v90
    %v99 = vpack.c.b16 %v95, %v91
    %v100 = vpack.c.b16 %v96, %v92
    %v101 = vpack.c.b16 %v97, %v93
    %vm106 = vcmask 130048
    %v108 = vsel %vm106, %v81, 0
    %110 = vmatprep.subr.bf16.mxu0 %v99
    %111 = vmatpush1.bf16.msra.mxu0 %v98
    %112 = vmatprep.subr.bf16.mxu0 0
    %113 = vmatpush1.bf16.msra.mxu0 0
    %114 = vmatprep.subr.bf16.mxu0 0
    %115 = vmatpush1.bf16.msra.mxu0 0
    %116 = vmatprep.subr.bf16.mxu0 0
    %117 = vmatpush1.bf16.msra.mxu0 0
    %118 = vmatprep.subr.bf16.mxu0 0
    %119 = vmatpush1.bf16.msra.mxu0 0
    %120 = vmatprep.subr.bf16.mxu0 0
    %121 = vmatpush1.bf16.msra.mxu0 0
    %122 = vmatprep.subr.bf16.mxu0 0
    %123 = vmatpush1.bf16.msra.mxu0 0
    %124 = vmatprep.subr.bf16.mxu0 0
    %125 = vmatpush1.bf16.msra.mxu0 0
    %126 = vmatprep.subr.bf16.mxu0 0
    %127 = vmatpush1.bf16.msra.mxu0 0
    %128 = vmatprep.subr.bf16.mxu0 0
    %129 = vmatpush1.bf16.msra.mxu0 0
    %130 = vmatprep.subr.bf16.mxu0 0
    %131 = vmatpush1.bf16.msra.mxu0 0
    %132 = vmatprep.subr.bf16.mxu0 0
    %133 = vmatpush1.bf16.msra.mxu0 0
    %134 = vmatprep.subr.bf16.mxu0 0
    %135 = vmatpush1.bf16.msra.mxu0 0
    %136 = vmatprep.subr.bf16.mxu0 0
    %137 = vmatpush1.bf16.msra.mxu0 0
    %138 = vmatprep.subr.bf16.mxu0 0
    %139 = vmatpush1.bf16.msra.mxu0 0
    %140 = vmatprep.subr.bf16.mxu0 0
    %141 = vmatpush1.bf16.msra.mxu0 0
    %142 = vmatprep.mubr.bf16.mxu0 0
    %143 = vmatmul.mubr.bf16.gmra.mrb[0].mxu0 %v108
    %v144 = vpop.f32.mrb[0].mxu0
    %v145 = vadd.f32 0.0, %v144
    %v146 = vpop.f32.mrb[0].mxu0
    %v147 = vadd.f32 0.0, %v146
    %v148 = vpop.f32.mrb[0].mxu0
    %v149 = vpop.f32.mrb[0].mxu0
    %150 = vdwg.mxu0
    %151 = vmatprep.subr.bf16.mxu0 %v101
    %152 = vmatpush1.bf16.msra.mxu0 %v100
    %153 = vmatprep.subr.bf16.mxu0 0
    %154 = vmatpush1.bf16.msra.mxu0 0
    %155 = vmatprep.subr.bf16.mxu0 0
    %156 = vmatpush1.bf16.msra.mxu0 0
    %157 = vmatprep.subr.bf16.mxu0 0
    %158 = vmatpush1.bf16.msra.mxu0 0
    %159 = vmatprep.subr.bf16.mxu0 0
    %160 = vmatpush1.bf16.msra.mxu0 0
    %161 = vmatprep.subr.bf16.mxu0 0
    %162 = vmatpush1.bf16.msra.mxu0 0
    %163 = vmatprep.subr.bf16.mxu0 0
    %164 = vmatpush1.bf16.msra.mxu0 0
    %165 = vmatprep.subr.bf16.mxu0 0
    %166 = vmatpush1.bf16.msra.mxu0 0
    %167 = vmatprep.subr.bf16.mxu0 0
    %168 = vmatpush1.bf16.msra.mxu0 0
    %169 = vmatprep.subr.bf16.mxu0 0
    %170 = vmatpush1.bf16.msra.mxu0 0
    %171 = vmatprep.subr.bf16.mxu0 0
    %172 = vmatpush1.bf16.msra.mxu0 0
    %173 = vmatprep.subr.bf16.mxu0 0
    %174 = vmatpush1.bf16.msra.mxu0 0
    %175 = vmatprep.subr.bf16.mxu0 0
    %176 = vmatpush1.bf16.msra.mxu0 0
    %177 = vmatprep.subr.bf16.mxu0 0
    %178 = vmatpush1.bf16.msra.mxu0 0
    %179 = vmatprep.subr.bf16.mxu0 0
    %180 = vmatpush1.bf16.msra.mxu0 0
    %181 = vmatprep.subr.bf16.mxu0 0
    %182 = vmatpush1.bf16.msra.mxu0 0
    %183 = vmatprep.mubr.bf16.mxu0 0
    %184 = vmatmul.mubr.bf16.gmra.mrb[0].mxu0 %v108
    %v185 = vpop.f32.mrb[0].mxu0
    %v186 = vadd.f32 0.0, %v185
    %v187 = vpop.f32.mrb[0].mxu0
    %v188 = vadd.f32 0.0, %v187
    %v189 = vpop.f32.mrb[0].mxu0
    %v190 = vpop.f32.mrb[0].mxu0
    %191 = vdwg.mxu0
    %v192 = vpack.c.bf16 %v145, %v145
    %v193 = vpack.c.bf16 %v147, %v147
    %v194 = vpack.c.bf16 %v186, %v186
    %v195 = vpack.c.bf16 %v188, %v188
    %v196 = vld [vmem:[%s2] sm:$0xf]
    %v199 = vunpack.c.l.s4 1966171168
    %v200 = vunpack.c.0.s8 %v199
    %v201 = vlaneseq
    %v202 = vshrl.u32 %v201, 7
    %v203 = vsub.s32 %v200, %v202
    %v204 = vrot.slane %v196, %v203
    %v205 = vcombine.high %v204, %v204
    %v207 = vunpack.c.l.s4 1966171168
    %v208 = vunpack.c.0.s8 %v207
    %v209 = vlaneseq
    %v210 = vshrl.u32 %v209, 7
    %v211 = vsub.s32 %v208, %v210
    %v212 = vrot.slane %v204, %v211
    %v214 = vunpack.c.l.s4 1966171168
    %v215 = vunpack.c.0.s8 %v214
    %v216 = vlaneseq
    %v217 = vshrl.u32 %v216, 7
    %v218 = vsub.s32 %v215, %v217
    %v219 = vrot.slane %v205, %v218
    %v220 = vcombine.high %v212, %v212
    %v221 = vcombine.high %v219, %v219
    %v223 = vpack.i.b16 %v212, %v212
    %v225 = vlaneseq
    %v226 = vshrl.u32 %v225, 7
    %v227 = vsub.s32 0, %v226
    %v228 = vrot.slane %v223, %v227
    %v230 = vpack.i.b16 %v219, %v219
    %v232 = vlaneseq
    %v233 = vshrl.u32 %v232, 7
    %v234 = vsub.s32 0, %v233
    %v235 = vrot.slane %v230, %v234
    %v237 = vpack.i.b16 %v220, %v220
    %v239 = vlaneseq
    %v240 = vshrl.u32 %v239, 7
    %v241 = vsub.s32 0, %v240
    %v242 = vrot.slane %v237, %v241
    %v244 = vpack.i.b16 %v221, %v221
    %v246 = vlaneseq
    %v247 = vshrl.u32 %v246, 7
    %v248 = vsub.s32 0, %v247
    %v249 = vrot.slane %v244, %v248
    %v250 = vadd.bf16 %v192, %v228
    %v251 = vadd.bf16 %v193, %v235
    %v252 = vadd.bf16 %v194, %v242
    %v253 = vadd.bf16 %v195, %v249
    %v254 = vmax.bf16 %v250, 0
    %v255 = vmax.bf16 %v251, 0
    %v256 = vmax.bf16 %v252, 0
    %v257 = vmax.bf16 %v253, 0
    %v258 = vld [vmem:[#allocation7] sm:$0xff]
    %v259 = vld [vmem:[#allocation7 + $0x8] sm:$0xf]
    %v260 = vld [vmem:[#allocation7 + $0xc] sm:$0xff]
    %v261 = vld [vmem:[#allocation7 + $0x14] sm:$0xf]
    %v262 = vld [vmem:[#allocation7 + $0x18] sm:$0xff]
    %v263 = vld [vmem:[#allocation7 + $0x20] sm:$0xf]
    %v264 = vld [vmem:[#allocation7 + $0x24] sm:$0xff]
    %v265 = vld [vmem:[#allocation7 + $0x2c] sm:$0xf]
    %v266 = vld [vmem:[#allocation7 + $0x30] sm:$0xff]
    %v267 = vld [vmem:[#allocation7 + $0x38] sm:$0xf]
    %v268 = vld [vmem:[#allocation7 + $0x3c] sm:$0xff]
    %v269 = vld [vmem:[#allocation7 + $0x44] sm:$0xf]
    %v270 = vld [vmem:[#allocation7 + $0x48] sm:$0xff]
    %v271 = vld [vmem:[#allocation7 + $0x50] sm:$0xf]
    %v272 = vld [vmem:[#allocation7 + $0x54] sm:$0xff]
    %v273 = vld [vmem:[#allocation7 + $0x5c] sm:$0xf]
    %v274 = vld [vmem:[#allocation7 + $0x60] sm:$0xff]
    %v275 = vld [vmem:[#allocation7 + $0x68] sm:$0xf]
    %v276 = vld [vmem:[#allocation7 + $0x6c] sm:$0xff]
    %v277 = vld [vmem:[#allocation7 + $0x74] sm:$0xf]
    %v278 = vld [vmem:[#allocation7 + $0x78] sm:$0xff]
    %v279 = vld [vmem:[#allocation7 + $0x80] sm:$0xf]
    %v280 = vld [vmem:[#allocation7 + $0x84] sm:$0xff]
    %v281 = vld [vmem:[#allocation7 + $0x8c] sm:$0xf]
    %v282 = vld [vmem:[#allocation7 + $0x90] sm:$0xff]
    %v283 = vld [vmem:[#allocation7 + $0x98] sm:$0xf]
    %v284 = vld [vmem:[#allocation7 + $0x9c] sm:$0xff]
    %v285 = vld [vmem:[#allocation7 + $0xa4] sm:$0xf]
    %v286 = vld [vmem:[#allocation7 + $0xa8] sm:$0xff]
    %v287 = vld [vmem:[#allocation7 + $0xb0] sm:$0xf]
    %v288 = vld [vmem:[#allocation7 + $0xb4] sm:$0xff]
    %v289 = vld [vmem:[#allocation7 + $0xbc] sm:$0xf]
    %v290 = vld [vmem:[#allocation7 + $0xc0] sm:$0xff]
    %v291 = vld [vmem:[#allocation7 + $0xc8] sm:$0xf]
    %v292 = vld [vmem:[#allocation7 + $0xcc] sm:$0xff]
    %v293 = vld [vmem:[#allocation7 + $0xd4] sm:$0xf]
    %v294 = vld [vmem:[#allocation7 + $0xd8] sm:$0xff]
    %v295 = vld [vmem:[#allocation7 + $0xe0] sm:$0xf]
    %v296 = vld [vmem:[#allocation7 + $0xe4] sm:$0xff]
    %v297 = vld [vmem:[#allocation7 + $0xec] sm:$0xf]
    %v298 = vld [vmem:[#allocation7 + $0xf0] sm:$0xff]
    %v299 = vld [vmem:[#allocation7 + $0xf8] sm:$0xf]
    %v300 = vld [vmem:[#allocation7 + $0xfc] sm:$0xff]
    %v301 = vld [vmem:[#allocation7 + $0x104] sm:$0xf]
    %v302 = vld [vmem:[#allocation7 + $0x108] sm:$0xff]
    %v303 = vld [vmem:[#allocation7 + $0x110] sm:$0xf]
    %v304 = vld [vmem:[#allocation7 + $0x114] sm:$0xff]
    %v305 = vld [vmem:[#allocation7 + $0x11c] sm:$0xf]
    %v306 = vld [vmem:[#allocation7 + $0x120] sm:$0xff]
    %v307 = vld [vmem:[#allocation7 + $0x128] sm:$0xf]
    %v308 = vld [vmem:[#allocation7 + $0x12c] sm:$0xff]
    %v309 = vld [vmem:[#allocation7 + $0x134] sm:$0xf]
    %v310 = vld [vmem:[#allocation7 + $0x138] sm:$0xff]
    %v311 = vld [vmem:[#allocation7 + $0x140] sm:$0xf]
    %v312 = vld [vmem:[#allocation7 + $0x144] sm:$0xff]
    %v313 = vld [vmem:[#allocation7 + $0x14c] sm:$0xf]
    %v314 = vld [vmem:[#allocation7 + $0x150] sm:$0xff]
    %v315 = vld [vmem:[#allocation7 + $0x158] sm:$0xf]
    %v316 = vld [vmem:[#allocation7 + $0x15c] sm:$0xff]
    %v317 = vld [vmem:[#allocation7 + $0x164] sm:$0xf]
    %v318 = vld [vmem:[#allocation7 + $0x168] sm:$0xff]
    %v319 = vld [vmem:[#allocation7 + $0x170] sm:$0xf]
    %v320 = vld [vmem:[#allocation7 + $0x174] sm:$0xff]
    %v321 = vld [vmem:[#allocation7 + $0x17c] sm:$0xf]
    %v322 = vld [vmem:[#allocation7 + $0x180] sm:$0xff]
    %v323 = vld [vmem:[#allocation7 + $0x188] sm:$0xf]
    %v324 = vld [vmem:[#allocation7 + $0x18c] sm:$0xff]
    %v325 = vld [vmem:[#allocation7 + $0x194] sm:$0xf]
    %v326 = vld [vmem:[#allocation7 + $0x198] sm:$0xff]
    %v327 = vld [vmem:[#allocation7 + $0x1a0] sm:$0xf]
    %v328 = vld [vmem:[#allocation7 + $0x1a4] sm:$0xff]
    %v329 = vld [vmem:[#allocation7 + $0x1ac] sm:$0xf]
    %v330 = vld [vmem:[#allocation7 + $0x1b0] sm:$0xff]
    %v331 = vld [vmem:[#allocation7 + $0x1b8] sm:$0xf]
    %v332 = vld [vmem:[#allocation7 + $0x1bc] sm:$0xff]
    %v333 = vld [vmem:[#allocation7 + $0x1c4] sm:$0xf]
    %v334 = vld [vmem:[#allocation7 + $0x1c8] sm:$0xff]
    %v335 = vld [vmem:[#allocation7 + $0x1d0] sm:$0xf]
    %v336 = vld [vmem:[#allocation7 + $0x1d4] sm:$0xff]
    %v337 = vld [vmem:[#allocation7 + $0x1dc] sm:$0xf]
    %v338 = vld [vmem:[#allocation7 + $0x1e0] sm:$0xff]
    %v339 = vld [vmem:[#allocation7 + $0x1e8] sm:$0xf]
    %v340 = vld [vmem:[#allocation7 + $0x1ec] sm:$0xff]
    %v341 = vld [vmem:[#allocation7 + $0x1f4] sm:$0xf]
    %v342 = vld [vmem:[#allocation7 + $0x1f8] sm:$0xff]
    %v343 = vld [vmem:[#allocation7 + $0x200] sm:$0xf]
    %v344 = vld [vmem:[#allocation7 + $0x204] sm:$0xff]
    %v345 = vld [vmem:[#allocation7 + $0x20c] sm:$0xf]
    %v346 = vld [vmem:[#allocation7 + $0x210] sm:$0xff]
    %v347 = vld [vmem:[#allocation7 + $0x218] sm:$0xf]
    %v348 = vld [vmem:[#allocation7 + $0x21c] sm:$0xff]
    %v349 = vld [vmem:[#allocation7 + $0x224] sm:$0xf]
    %v350 = vld [vmem:[#allocation7 + $0x228] sm:$0xff]
    %v351 = vld [vmem:[#allocation7 + $0x230] sm:$0xf]
    %v352 = vld [vmem:[#allocation7 + $0x234] sm:$0xff]
    %v353 = vld [vmem:[#allocation7 + $0x23c] sm:$0xf]
    %v354 = vld [vmem:[#allocation7 + $0x240] sm:$0xff]
    %v355 = vld [vmem:[#allocation7 + $0x248] sm:$0xf]
    %v356 = vld [vmem:[#allocation7 + $0x24c] sm:$0xff]
    %v357 = vld [vmem:[#allocation7 + $0x254] sm:$0xf]
    %v358 = vld [vmem:[#allocation7 + $0x258] sm:$0xff]
    %v359 = vld [vmem:[#allocation7 + $0x260] sm:$0xf]
    %v360 = vld [vmem:[#allocation7 + $0x264] sm:$0xff]
    %v361 = vld [vmem:[#allocation7 + $0x26c] sm:$0xf]
    %v362 = vld [vmem:[#allocation7 + $0x270] sm:$0xff]
    %v363 = vld [vmem:[#allocation7 + $0x278] sm:$0xf]
    %v364 = vld [vmem:[#allocation7 + $0x27c] sm:$0xff]
    %v365 = vld [vmem:[#allocation7 + $0x284] sm:$0xf]
    %v366 = vld [vmem:[#allocation7 + $0x288] sm:$0xff]
    %v367 = vld [vmem:[#allocation7 + $0x290] sm:$0xf]
    %v368 = vld [vmem:[#allocation7 + $0x294] sm:$0xff]
    %v369 = vld [vmem:[#allocation7 + $0x29c] sm:$0xf]
    %v370 = vld [vmem:[#allocation7 + $0x2a0] sm:$0xff]
    %v371 = vld [vmem:[#allocation7 + $0x2a8] sm:$0xf]
    %v372 = vld [vmem:[#allocation7 + $0x2ac] sm:$0xff]
    %v373 = vld [vmem:[#allocation7 + $0x2b4] sm:$0xf]
    %v374 = vld [vmem:[#allocation7 + $0x2b8] sm:$0xff]
    %v375 = vld [vmem:[#allocation7 + $0x2c0] sm:$0xf]
    %v376 = vld [vmem:[#allocation7 + $0x2c4] sm:$0xff]
    %v377 = vld [vmem:[#allocation7 + $0x2cc] sm:$0xf]
    %v378 = vld [vmem:[#allocation7 + $0x2d0] sm:$0xff]
    %v379 = vld [vmem:[#allocation7 + $0x2d8] sm:$0xf]
    %v380 = vld [vmem:[#allocation7 + $0x2dc] sm:$0xff]
    %v381 = vld [vmem:[#allocation7 + $0x2e4] sm:$0xf]
    %v382 = vld [vmem:[#allocation7 + $0x2e8] sm:$0xff]
    %v383 = vld [vmem:[#allocation7 + $0x2f0] sm:$0xf]
    %v384 = vld [vmem:[#allocation7 + $0x2f4] sm:$0xff]
    %v385 = vld [vmem:[#allocation7 + $0x2fc] sm:$0xf]
    %v514 = vunpack.c.l.b16 %v258
    %v515 = vunpack.c.h.b16 %v258
    %v516 = vunpack.c.l.b16 %v259
    %v517 = vunpack.c.l.b16 %v260
    %v518 = vunpack.c.h.b16 %v260
    %v519 = vunpack.c.l.b16 %v261
    %v520 = vunpack.c.l.b16 %v262
    %v521 = vunpack.c.h.b16 %v262
    %v522 = vunpack.c.l.b16 %v263
    %v523 = vunpack.c.l.b16 %v264
    %v524 = vunpack.c.h.b16 %v264
    %v525 = vunpack.c.l.b16 %v265
    %v526 = vunpack.c.l.b16 %v266
    %v527 = vunpack.c.h.b16 %v266
    %v528 = vunpack.c.l.b16 %v267
    %v529 = vunpack.c.l.b16 %v268
    %v530 = vunpack.c.h.b16 %v268
    %v531 = vunpack.c.l.b16 %v269
    %v532 = vunpack.c.l.b16 %v270
    %v533 = vunpack.c.h.b16 %v270
    %v534 = vunpack.c.l.b16 %v271
    %v535 = vunpack.c.l.b16 %v272
    %v536 = vunpack.c.h.b16 %v272
    %v537 = vunpack.c.l.b16 %v273
    %v538 = vunpack.c.l.b16 %v274
    %v539 = vunpack.c.h.b16 %v274
    %v540 = vunpack.c.l.b16 %v275
    %v541 = vunpack.c.l.b16 %v276
    %v542 = vunpack.c.h.b16 %v276
    %v543 = vunpack.c.l.b16 %v277
    %v544 = vunpack.c.l.b16 %v278
    %v545 = vunpack.c.h.b16 %v278
    %v546 = vunpack.c.l.b16 %v279
    %v547 = vunpack.c.l.b16 %v280
    %v548 = vunpack.c.h.b16 %v280
    %v549 = vunpack.c.l.b16 %v281
    %v550 = vunpack.c.l.b16 %v282
    %v551 = vunpack.c.h.b16 %v282
    %v552 = vunpack.c.l.b16 %v283
    %v553 = vunpack.c.l.b16 %v284
    %v554 = vunpack.c.h.b16 %v284
    %v555 = vunpack.c.l.b16 %v285
    %v556 = vunpack.c.l.b16 %v286
    %v557 = vunpack.c.h.b16 %v286
    %v558 = vunpack.c.l.b16 %v287
    %v559 = vunpack.c.l.b16 %v288
    %v560 = vunpack.c.h.b16 %v288
    %v561 = vunpack.c.l.b16 %v289
    %v562 = vunpack.c.l.b16 %v290
    %v563 = vunpack.c.h.b16 %v290
    %v564 = vunpack.c.l.b16 %v291
    %v565 = vunpack.c.l.b16 %v292
    %v566 = vunpack.c.h.b16 %v292
    %v567 = vunpack.c.l.b16 %v293
    %v568 = vunpack.c.l.b16 %v294
    %v569 = vunpack.c.h.b16 %v294
    %v570 = vunpack.c.l.b16 %v295
    %v571 = vunpack.c.l.b16 %v296
    %v572 = vunpack.c.h.b16 %v296
    %v573 = vunpack.c.l.b16 %v297
    %v574 = vunpack.c.l.b16 %v298
    %v575 = vunpack.c.h.b16 %v298
    %v576 = vunpack.c.l.b16 %v299
    %v577 = vunpack.c.l.b16 %v300
    %v578 = vunpack.c.h.b16 %v300
    %v579 = vunpack.c.l.b16 %v301
    %v580 = vunpack.c.l.b16 %v302
    %v581 = vunpack.c.h.b16 %v302
    %v582 = vunpack.c.l.b16 %v303
    %v583 = vunpack.c.l.b16 %v304
    %v584 = vunpack.c.h.b16 %v304
    %v585 = vunpack.c.l.b16 %v305
    %v586 = vunpack.c.l.b16 %v306
    %v587 = vunpack.c.h.b16 %v306
    %v588 = vunpack.c.l.b16 %v307
    %v589 = vunpack.c.l.b16 %v308
    %v590 = vunpack.c.h.b16 %v308
    %v591 = vunpack.c.l.b16 %v309
    %v592 = vunpack.c.l.b16 %v310
    %v593 = vunpack.c.h.b16 %v310
    %v594 = vunpack.c.l.b16 %v311
    %v595 = vunpack.c.l.b16 %v312
    %v596 = vunpack.c.h.b16 %v312
    %v597 = vunpack.c.l.b16 %v313
    %v598 = vunpack.c.l.b16 %v314
    %v599 = vunpack.c.h.b16 %v314
    %v600 = vunpack.c.l.b16 %v315
    %v601 = vunpack.c.l.b16 %v316
    %v602 = vunpack.c.h.b16 %v316
    %v603 = vunpack.c.l.b16 %v317
    %v604 = vunpack.c.l.b16 %v318
    %v605 = vunpack.c.h.b16 %v318
    %v606 = vunpack.c.l.b16 %v319
    %v607 = vunpack.c.l.b16 %v320
    %v608 = vunpack.c.h.b16 %v320
    %v609 = vunpack.c.l.b16 %v321
    %v610 = vunpack.c.l.b16 %v322
    %v611 = vunpack.c.h.b16 %v322
    %v612 = vunpack.c.l.b16 %v323
    %v613 = vunpack.c.l.b16 %v324
    %v614 = vunpack.c.h.b16 %v324
    %v615 = vunpack.c.l.b16 %v325
    %v616 = vunpack.c.l.b16 %v326
    %v617 = vunpack.c.h.b16 %v326
    %v618 = vunpack.c.l.b16 %v327
    %v619 = vunpack.c.l.b16 %v328
    %v620 = vunpack.c.h.b16 %v328
    %v621 = vunpack.c.l.b16 %v329
    %v622 = vunpack.c.l.b16 %v330
    %v623 = vunpack.c.h.b16 %v330
    %v624 = vunpack.c.l.b16 %v331
    %v625 = vunpack.c.l.b16 %v332
    %v626 = vunpack.c.h.b16 %v332
    %v627 = vunpack.c.l.b16 %v333
    %v628 = vunpack.c.l.b16 %v334
    %v629 = vunpack.c.h.b16 %v334
    %v630 = vunpack.c.l.b16 %v335
    %v631 = vunpack.c.l.b16 %v336
    %v632 = vunpack.c.h.b16 %v336
    %v633 = vunpack.c.l.b16 %v337
    %v634 = vunpack.c.l.b16 %v338
    %v635 = vunpack.c.h.b16 %v338
    %v636 = vunpack.c.l.b16 %v339
    %v637 = vunpack.c.l.b16 %v340
    %v638 = vunpack.c.h.b16 %v340
    %v639 = vunpack.c.l.b16 %v341
    %v640 = vunpack.c.l.b16 %v342
    %v641 = vunpack.c.h.b16 %v342
    %v642 = vunpack.c.l.b16 %v343
    %v643 = vunpack.c.l.b16 %v344
    %v644 = vunpack.c.h.b16 %v344
    %v645 = vunpack.c.l.b16 %v345
    %v646 = vunpack.c.l.b16 %v346
    %v647 = vunpack.c.h.b16 %v346
    %v648 = vunpack.c.l.b16 %v347
    %v649 = vunpack.c.l.b16 %v348
    %v650 = vunpack.c.h.b16 %v348
    %v651 = vunpack.c.l.b16 %v349
    %v652 = vunpack.c.l.b16 %v350
    %v653 = vunpack.c.h.b16 %v350
    %v654 = vunpack.c.l.b16 %v351
    %v655 = vunpack.c.l.b16 %v352
    %v656 = vunpack.c.h.b16 %v352
    %v657 = vunpack.c.l.b16 %v353
    %v658 = vunpack.c.l.b16 %v354
    %v659 = vunpack.c.h.b16 %v354
    %v660 = vunpack.c.l.b16 %v355
    %v661 = vunpack.c.l.b16 %v356
    %v662 = vunpack.c.h.b16 %v356
    %v663 = vunpack.c.l.b16 %v357
    %v664 = vunpack.c.l.b16 %v358
    %v665 = vunpack.c.h.b16 %v358
    %v666 = vunpack.c.l.b16 %v359
    %v667 = vunpack.c.l.b16 %v360
    %v668 = vunpack.c.h.b16 %v360
    %v669 = vunpack.c.l.b16 %v361
    %v670 = vunpack.c.l.b16 %v362
    %v671 = vunpack.c.h.b16 %v362
    %v672 = vunpack.c.l.b16 %v363
    %v673 = vunpack.c.l.b16 %v364
    %v674 = vunpack.c.h.b16 %v364
    %v675 = vunpack.c.l.b16 %v365
    %v676 = vunpack.c.l.b16 %v366
    %v677 = vunpack.c.h.b16 %v366
    %v678 = vunpack.c.l.b16 %v367
    %v679 = vunpack.c.l.b16 %v368
    %v680 = vunpack.c.h.b16 %v368
    %v681 = vunpack.c.l.b16 %v369
    %v682 = vunpack.c.l.b16 %v370
    %v683 = vunpack.c.h.b16 %v370
    %v684 = vunpack.c.l.b16 %v371
    %v685 = vunpack.c.l.b16 %v372
    %v686 = vunpack.c.h.b16 %v372
    %v687 = vunpack.c.l.b16 %v373
    %v688 = vunpack.c.l.b16 %v374
    %v689 = vunpack.c.h.b16 %v374
    %v690 = vunpack.c.l.b16 %v375
    %v691 = vunpack.c.l.b16 %v376
    %v692 = vunpack.c.h.b16 %v376
    %v693 = vunpack.c.l.b16 %v377
    %v694 = vunpack.c.l.b16 %v378
    %v695 = vunpack.c.h.b16 %v378
    %v696 = vunpack.c.l.b16 %v379
    %v697 = vunpack.c.l.b16 %v380
    %v698 = vunpack.c.h.b16 %v380
    %v699 = vunpack.c.l.b16 %v381
    %v700 = vunpack.c.l.b16 %v382
    %v701 = vunpack.c.h.b16 %v382
    %v702 = vunpack.c.l.b16 %v383
    %v703 = vunpack.c.l.b16 %v384
    %v704 = vunpack.c.h.b16 %v384
    %v705 = vunpack.c.l.b16 %v385
    %v706 = vpack.c.b16 %v517, %v514
    %v707 = vpack.c.b16 %v518, %v515
    %v708 = vpack.c.b16 %v519, %v516
    %v709 = vpack.c.b16 %v523, %v520
    %v710 = vpack.c.b16 %v524, %v521
    %v711 = vpack.c.b16 %v525, %v522
    %v712 = vpack.c.b16 %v529, %v526
    %v713 = vpack.c.b16 %v530, %v527
    %v714 = vpack.c.b16 %v531, %v528
    %v715 = vpack.c.b16 %v535, %v532
    %v716 = vpack.c.b16 %v536, %v533
    %v717 = vpack.c.b16 %v537, %v534
    %v718 = vpack.c.b16 %v541, %v538
    %v719 = vpack.c.b16 %v542, %v539
    %v720 = vpack.c.b16 %v543, %v540
    %v721 = vpack.c.b16 %v547, %v544
    %v722 = vpack.c.b16 %v548, %v545
    %v723 = vpack.c.b16 %v549, %v546
    %v724 = vpack.c.b16 %v553, %v550
    %v725 = vpack.c.b16 %v554, %v551
    %v726 = vpack.c.b16 %v555, %v552
    %v727 = vpack.c.b16 %v559, %v556
    %v728 = vpack.c.b16 %v560, %v557
    %v729 = vpack.c.b16 %v561, %v558
    %v730 = vpack.c.b16 %v565, %v562
    %v731 = vpack.c.b16 %v566, %v563
    %v732 = vpack.c.b16 %v567, %v564
    %v733 = vpack.c.b16 %v571, %v568
    %v734 = vpack.c.b16 %v572, %v569
    %v735 = vpack.c.b16 %v573, %v570
    %v736 = vpack.c.b16 %v577, %v574
    %v737 = vpack.c.b16 %v578, %v575
    %v738 = vpack.c.b16 %v579, %v576
    %v739 = vpack.c.b16 %v583, %v580
    %v740 = vpack.c.b16 %v584, %v581
    %v741 = vpack.c.b16 %v585, %v582
    %v742 = vpack.c.b16 %v589, %v586
    %v743 = vpack.c.b16 %v590, %v587
    %v744 = vpack.c.b16 %v591, %v588
    %v745 = vpack.c.b16 %v595, %v592
    %v746 = vpack.c.b16 %v596, %v593
    %v747 = vpack.c.b16 %v597, %v594
    %v748 = vpack.c.b16 %v601, %v598
    %v749 = vpack.c.b16 %v602, %v599
    %v750 = vpack.c.b16 %v603, %v600
    %v751 = vpack.c.b16 %v607, %v604
    %v752 = vpack.c.b16 %v608, %v605
    %v753 = vpack.c.b16 %v609, %v606
    %v754 = vpack.c.b16 %v613, %v610
    %v755 = vpack.c.b16 %v614, %v611
    %v756 = vpack.c.b16 %v615, %v612
    %v757 = vpack.c.b16 %v619, %v616
    %v758 = vpack.c.b16 %v620, %v617
    %v759 = vpack.c.b16 %v621, %v618
    %v760 = vpack.c.b16 %v625, %v622
    %v761 = vpack.c.b16 %v626, %v623
    %v762 = vpack.c.b16 %v627, %v624
    %v763 = vpack.c.b16 %v631, %v628
    %v764 = vpack.c.b16 %v632, %v629
    %v765 = vpack.c.b16 %v633, %v630
    %v766 = vpack.c.b16 %v637, %v634
    %v767 = vpack.c.b16 %v638, %v635
    %v768 = vpack.c.b16 %v639, %v636
    %v769 = vpack.c.b16 %v643, %v640
    %v770 = vpack.c.b16 %v644, %v641
    %v771 = vpack.c.b16 %v645, %v642
    %v772 = vpack.c.b16 %v649, %v646
    %v773 = vpack.c.b16 %v650, %v647
    %v774 = vpack.c.b16 %v651, %v648
    %v775 = vpack.c.b16 %v655, %v652
    %v776 = vpack.c.b16 %v656, %v653
    %v777 = vpack.c.b16 %v657, %v654
    %v778 = vpack.c.b16 %v661, %v658
    %v779 = vpack.c.b16 %v662, %v659
    %v780 = vpack.c.b16 %v663, %v660
    %v781 = vpack.c.b16 %v667, %v664
    %v782 = vpack.c.b16 %v668, %v665
    %v783 = vpack.c.b16 %v669, %v666
    %v784 = vpack.c.b16 %v673, %v670
    %v785 = vpack.c.b16 %v674, %v671
    %v786 = vpack.c.b16 %v675, %v672
    %v787 = vpack.c.b16 %v679, %v676
    %v788 = vpack.c.b16 %v680, %v677
    %v789 = vpack.c.b16 %v681, %v678
    %v790 = vpack.c.b16 %v685, %v682
    %v791 = vpack.c.b16 %v686, %v683
    %v792 = vpack.c.b16 %v687, %v684
    %v793 = vpack.c.b16 %v691, %v688
    %v794 = vpack.c.b16 %v692, %v689
    %v795 = vpack.c.b16 %v693, %v690
    %v796 = vpack.c.b16 %v697, %v694
    %v797 = vpack.c.b16 %v698, %v695
    %v798 = vpack.c.b16 %v699, %v696
    %v799 = vpack.c.b16 %v703, %v700
    %v800 = vpack.c.b16 %v704, %v701
    %v801 = vpack.c.b16 %v705, %v702
    %898 = vmatprep.subr.bf16.mxu0 %v707
    %899 = vmatpush1.bf16.msra.mxu0 %v706
    %900 = vmatprep.subr.bf16.mxu0 %v710
    %901 = vmatpush1.bf16.msra.mxu0 %v709
    %902 = vmatprep.subr.bf16.mxu0 %v713
    %903 = vmatpush1.bf16.msra.mxu0 %v712
    %904 = vmatprep.subr.bf16.mxu0 %v716
    %905 = vmatpush1.bf16.msra.mxu0 %v715
    %906 = vmatprep.subr.bf16.mxu0 %v719
    %907 = vmatpush1.bf16.msra.mxu0 %v718
    %908 = vmatprep.subr.bf16.mxu0 %v722
    %909 = vmatpush1.bf16.msra.mxu0 %v721
    %910 = vmatprep.subr.bf16.mxu0 %v725
    %911 = vmatpush1.bf16.msra.mxu0 %v724
    %912 = vmatprep.subr.bf16.mxu0 %v728
    %913 = vmatpush1.bf16.msra.mxu0 %v727
    %914 = vmatprep.subr.bf16.mxu0 %v731
    %915 = vmatpush1.bf16.msra.mxu0 %v730
    %916 = vmatprep.subr.bf16.mxu0 %v734
    %917 = vmatpush1.bf16.msra.mxu0 %v733
    %918 = vmatprep.subr.bf16.mxu0 %v737
    %919 = vmatpush1.bf16.msra.mxu0 %v736
    %920 = vmatprep.subr.bf16.mxu0 %v740
    %921 = vmatpush1.bf16.msra.mxu0 %v739
    %922 = vmatprep.subr.bf16.mxu0 %v743
    %923 = vmatpush1.bf16.msra.mxu0 %v742
    %924 = vmatprep.subr.bf16.mxu0 %v746
    %925 = vmatpush1.bf16.msra.mxu0 %v745
    %926 = vmatprep.subr.bf16.mxu0 %v749
    %927 = vmatpush1.bf16.msra.mxu0 %v748
    %928 = vmatprep.subr.bf16.mxu0 %v752
    %929 = vmatpush1.bf16.msra.mxu0 %v751
    %930 = vmatprep.mubr.bf16.mxu0 %v255
    %931 = vmatmul.mubr.bf16.gmra.mrb[0].mxu0 %v254
    %v932 = vpop.f32.mrb[0].mxu0
    %v933 = vadd.f32 0.0, %v932
    %v934 = vpop.f32.mrb[0].mxu0
    %v935 = vadd.f32 0.0, %v934
    %v936 = vpop.f32.mrb[0].mxu0
    %v937 = vpop.f32.mrb[0].mxu0
    %938 = vdwg.mxu0
    %939 = vmatprep.subr.bf16.mxu0 %v755
    %940 = vmatpush1.bf16.msra.mxu0 %v754
    %941 = vmatprep.subr.bf16.mxu0 %v758
    %942 = vmatpush1.bf16.msra.mxu0 %v757
    %943 = vmatprep.subr.bf16.mxu0 %v761
    %944 = vmatpush1.bf16.msra.mxu0 %v760
    %945 = vmatprep.subr.bf16.mxu0 %v764
    %946 = vmatpush1.bf16.msra.mxu0 %v763
    %947 = vmatprep.subr.bf16.mxu0 %v767
    %948 = vmatpush1.bf16.msra.mxu0 %v766
    %949 = vmatprep.subr.bf16.mxu0 %v770
    %950 = vmatpush1.bf16.msra.mxu0 %v769
    %951 = vmatprep.subr.bf16.mxu0 %v773
    %952 = vmatpush1.bf16.msra.mxu0 %v772
    %953 = vmatprep.subr.bf16.mxu0 %v776
    %954 = vmatpush1.bf16.msra.mxu0 %v775
    %955 = vmatprep.subr.bf16.mxu0 %v779
    %956 = vmatpush1.bf16.msra.mxu0 %v778
    %957 = vmatprep.subr.bf16.mxu0 %v782
    %958 = vmatpush1.bf16.msra.mxu0 %v781
    %959 = vmatprep.subr.bf16.mxu0 %v785
    %960 = vmatpush1.bf16.msra.mxu0 %v784
    %961 = vmatprep.subr.bf16.mxu0 %v788
    %962 = vmatpush1.bf16.msra.mxu0 %v787
    %963 = vmatprep.subr.bf16.mxu0 %v791
    %964 = vmatpush1.bf16.msra.mxu0 %v790
    %965 = vmatprep.subr.bf16.mxu0 %v794
    %966 = vmatpush1.bf16.msra.mxu0 %v793
    %967 = vmatprep.subr.bf16.mxu0 %v797
    %968 = vmatpush1.bf16.msra.mxu0 %v796
    %969 = vmatprep.subr.bf16.mxu0 %v800
    %970 = vmatpush1.bf16.msra.mxu0 %v799
    %971 = vmatprep.mubr.bf16.mxu0 %v257
    %972 = vmatmul.mubr.bf16.gmra.mrb[0].mxu0 %v256
    %v973 = vpop.f32.mrb[0].mxu0
    %v974 = vadd.f32 %v933, %v973
    %v975 = vpop.f32.mrb[0].mxu0
    %v976 = vadd.f32 %v935, %v975
    %v977 = vpop.f32.mrb[0].mxu0
    %v978 = vpop.f32.mrb[0].mxu0
    %979 = vdwg.mxu0
    %980 = vmatprep.subr.bf16.mxu0 0
    %981 = vmatpush1.bf16.msra.mxu0 %v708
    %982 = vmatprep.subr.bf16.mxu0 0
    %983 = vmatpush1.bf16.msra.mxu0 %v711
    %984 = vmatprep.subr.bf16.mxu0 0
    %985 = vmatpush1.bf16.msra.mxu0 %v714
    %986 = vmatprep.subr.bf16.mxu0 0
    %987 = vmatpush1.bf16.msra.mxu0 %v717
    %988 = vmatprep.subr.bf16.mxu0 0
    %989 = vmatpush1.bf16.msra.mxu0 %v720
    %990 = vmatprep.subr.bf16.mxu0 0
    %991 = vmatpush1.bf16.msra.mxu0 %v723
    %992 = vmatprep.subr.bf16.mxu0 0
    %993 = vmatpush1.bf16.msra.mxu0 %v726
    %994 = vmatprep.subr.bf16.mxu0 0
    %995 = vmatpush1.bf16.msra.mxu0 %v729
    %996 = vmatprep.subr.bf16.mxu0 0
    %997 = vmatpush1.bf16.msra.mxu0 %v732
    %998 = vmatprep.subr.bf16.mxu0 0
    %999 = vmatpush1.bf16.msra.mxu0 %v735
    %1000 = vmatprep.subr.bf16.mxu0 0
    %1001 = vmatpush1.bf16.msra.mxu0 %v738
    %1002 = vmatprep.subr.bf16.mxu0 0
    %1003 = vmatpush1.bf16.msra.mxu0 %v741
    %1004 = vmatprep.subr.bf16.mxu0 0
    %1005 = vmatpush1.bf16.msra.mxu0 %v744
    %1006 = vmatprep.subr.bf16.mxu0 0
    %1007 = vmatpush1.bf16.msra.mxu0 %v747
    %1008 = vmatprep.subr.bf16.mxu0 0
    %1009 = vmatpush1.bf16.msra.mxu0 %v750
    %1010 = vmatprep.subr.bf16.mxu0 0
    %1011 = vmatpush1.bf16.msra.mxu0 %v753
    %1012 = vmatprep.mubr.bf16.mxu0 %v255
    %1013 = vmatmul.mubr.bf16.gmra.mrb[0].mxu0 %v254
    %v1014 = vpop.f32.mrb[0].mxu0
    %v1015 = vadd.f32 0.0, %v1014
    %v1016 = vpop.f32.mrb[0].mxu0
    %v1017 = vpop.f32.mrb[0].mxu0
    %v1018 = vpop.f32.mrb[0].mxu0
    %1019 = vdwg.mxu0
    %1020 = vmatprep.subr.bf16.mxu0 0
    %1021 = vmatpush1.bf16.msra.mxu0 %v756
    %1022 = vmatprep.subr.bf16.mxu0 0
    %1023 = vmatpush1.bf16.msra.mxu0 %v759
    %1024 = vmatprep.subr.bf16.mxu0 0
    %1025 = vmatpush1.bf16.msra.mxu0 %v762
    %1026 = vmatprep.subr.bf16.mxu0 0
    %1027 = vmatpush1.bf16.msra.mxu0 %v765
    %1028 = vmatprep.subr.bf16.mxu0 0
    %1029 = vmatpush1.bf16.msra.mxu0 %v768
    %1030 = vmatprep.subr.bf16.mxu0 0
    %1031 = vmatpush1.bf16.msra.mxu0 %v771
    %1032 = vmatprep.subr.bf16.mxu0 0
    %1033 = vmatpush1.bf16.msra.mxu0 %v774
    %1034 = vmatprep.subr.bf16.mxu0 0
    %1035 = vmatpush1.bf16.msra.mxu0 %v777
    %1036 = vmatprep.subr.bf16.mxu0 0
    %1037 = vmatpush1.bf16.msra.mxu0 %v780
    %1038 = vmatprep.subr.bf16.mxu0 0
    %1039 = vmatpush1.bf16.msra.mxu0 %v783
    %1040 = vmatprep.subr.bf16.mxu0 0
    %1041 = vmatpush1.bf16.msra.mxu0 %v786
    %1042 = vmatprep.subr.bf16.mxu0 0
    %1043 = vmatpush1.bf16.msra.mxu0 %v789
    %1044 = vmatprep.subr.bf16.mxu0 0
    %1045 = vmatpush1.bf16.msra.mxu0 %v792
    %1046 = vmatprep.subr.bf16.mxu0 0
    %1047 = vmatpush1.bf16.msra.mxu0 %v795
    %1048 = vmatprep.subr.bf16.mxu0 0
    %1049 = vmatpush1.bf16.msra.mxu0 %v798
    %1050 = vmatprep.subr.bf16.mxu0 0
    %1051 = vmatpush1.bf16.msra.mxu0 %v801
    %1052 = vmatprep.mubr.bf16.mxu0 %v257
    %1053 = vmatmul.mubr.bf16.gmra.mrb[0].mxu0 %v256
    %v1054 = vpop.f32.mrb[0].mxu0
    %v1055 = vadd.f32 %v1015, %v1054
    %v1056 = vpop.f32.mrb[0].mxu0
    %v1057 = vpop.f32.mrb[0].mxu0
    %v1058 = vpop.f32.mrb[0].mxu0
    %1059 = vdwg.mxu0
    %v1060 = vpack.c.bf16 %v974, %v974
    %v1061 = vpack.c.bf16 %v976, %v976
    %v1062 = vpack.c.bf16 %v1055, %v1055
    %v1063 = vld [vmem:[%s4] sm:$0x7]
    %v1066 = vunpack.c.l.s4 1966171168
    %v1067 = vunpack.c.0.s8 %v1066
    %v1068 = vlaneseq
    %v1069 = vshrl.u32 %v1068, 7
    %v1070 = vsub.s32 %v1067, %v1069
    %v1071 = vrot.slane %v1063, %v1070
    %v1072 = vcombine.high %v1071, %v1071
    %v1074 = vunpack.c.l.s4 1966171168
    %v1075 = vunpack.c.0.s8 %v1074
    %v1076 = vlaneseq
    %v1077 = vshrl.u32 %v1076, 7
    %v1078 = vsub.s32 %v1075, %v1077
    %v1079 = vrot.slane %v1071, %v1078
    %v1081 = vunpack.c.l.s4 1966171168
    %v1082 = vunpack.c.0.s8 %v1081
    %v1083 = vlaneseq
    %v1084 = vshrl.u32 %v1083, 7
    %v1085 = vsub.s32 %v1082, %v1084
    %v1086 = vrot.slane %v1072, %v1085
    %v1087 = vcombine.high %v1079, %v1079
    %v1089 = vpack.i.b16 %v1079, %v1079
    %v1091 = vlaneseq
    %v1092 = vshrl.u32 %v1091, 7
    %v1093 = vsub.s32 0, %v1092
    %v1094 = vrot.slane %v1089, %v1093
    %v1096 = vpack.i.b16 %v1086, %v1086
    %v1098 = vlaneseq
    %v1099 = vshrl.u32 %v1098, 7
    %v1100 = vsub.s32 0, %v1099
    %v1101 = vrot.slane %v1096, %v1100
    %v1103 = vpack.i.b16 %v1087, %v1087
    %v1105 = vlaneseq
    %v1106 = vshrl.u32 %v1105, 7
    %v1107 = vsub.s32 0, %v1106
    %v1108 = vrot.slane %v1103, %v1107
    %v1109 = vadd.bf16 %v1060, %v1094
    %v1110 = vadd.bf16 %v1061, %v1101
    %v1111 = vadd.bf16 %v1062, %v1108
    %v1112 = vmax.bf16 %v1109, 0
    %v1113 = vmax.bf16 %v1110, 0
    %v1114 = vmax.bf16 %v1111, 0
    %v1115 = vld [vmem:[#allocation8] sm:$0xf]
    %v1116 = vld [vmem:[#allocation8 + $0x4] sm:$0xf]
    %v1117 = vld [vmem:[#allocation8 + $0x8] sm:$0xf]
    %v1118 = vld [vmem:[#allocation8 + $0xc] sm:$0xf]
    %v1119 = vld [vmem:[#allocation8 + $0x10] sm:$0xf]
    %v1120 = vld [vmem:[#allocation8 + $0x14] sm:$0xf]
    %v1121 = vld [vmem:[#allocation8 + $0x18] sm:$0xf]
    %v1122 = vld [vmem:[#allocation8 + $0x1c] sm:$0xf]
    %v1123 = vld [vmem:[#allocation8 + $0x20] sm:$0xf]
    %v1124 = vld [vmem:[#allocation8 + $0x24] sm:$0xf]
    %v1125 = vld [vmem:[#allocation8 + $0x28] sm:$0xf]
    %v1126 = vld [vmem:[#allocation8 + $0x2c] sm:$0xf]
    %v1127 = vld [vmem:[#allocation8 + $0x30] sm:$0xf]
    %v1128 = vld [vmem:[#allocation8 + $0x34] sm:$0xf]
    %v1129 = vld [vmem:[#allocation8 + $0x38] sm:$0xf]
    %v1130 = vld [vmem:[#allocation8 + $0x3c] sm:$0xf]
    %v1131 = vld [vmem:[#allocation8 + $0x40] sm:$0xf]
    %v1132 = vld [vmem:[#allocation8 + $0x44] sm:$0xf]
    %v1133 = vld [vmem:[#allocation8 + $0x48] sm:$0xf]
    %v1134 = vld [vmem:[#allocation8 + $0x4c] sm:$0xf]
    %v1135 = vld [vmem:[#allocation8 + $0x50] sm:$0xf]
    %v1136 = vld [vmem:[#allocation8 + $0x54] sm:$0xf]
    %v1137 = vld [vmem:[#allocation8 + $0x58] sm:$0xf]
    %v1138 = vld [vmem:[#allocation8 + $0x5c] sm:$0xf]
    %v1139 = vld [vmem:[#allocation8 + $0x60] sm:$0xf]
    %v1140 = vld [vmem:[#allocation8 + $0x64] sm:$0xf]
    %v1141 = vld [vmem:[#allocation8 + $0x68] sm:$0xf]
    %v1142 = vld [vmem:[#allocation8 + $0x6c] sm:$0xf]
    %v1143 = vld [vmem:[#allocation8 + $0x70] sm:$0xf]
    %v1144 = vld [vmem:[#allocation8 + $0x74] sm:$0xf]
    %v1145 = vld [vmem:[#allocation8 + $0x78] sm:$0xf]
    %v1146 = vld [vmem:[#allocation8 + $0x7c] sm:$0xf]
    %v1147 = vld [vmem:[#allocation8 + $0x80] sm:$0xf]
    %v1148 = vld [vmem:[#allocation8 + $0x84] sm:$0xf]
    %v1149 = vld [vmem:[#allocation8 + $0x88] sm:$0xf]
    %v1150 = vld [vmem:[#allocation8 + $0x8c] sm:$0xf]
    %v1151 = vld [vmem:[#allocation8 + $0x90] sm:$0xf]
    %v1152 = vld [vmem:[#allocation8 + $0x94] sm:$0xf]
    %v1153 = vld [vmem:[#allocation8 + $0x98] sm:$0xf]
    %v1154 = vld [vmem:[#allocation8 + $0x9c] sm:$0xf]
    %v1155 = vld [vmem:[#allocation8 + $0xa0] sm:$0xf]
    %v1156 = vld [vmem:[#allocation8 + $0xa4] sm:$0xf]
    %v1157 = vld [vmem:[#allocation8 + $0xa8] sm:$0xf]
    %v1158 = vld [vmem:[#allocation8 + $0xac] sm:$0xf]
    %v1159 = vld [vmem:[#allocation8 + $0xb0] sm:$0xf]
    %v1160 = vld [vmem:[#allocation8 + $0xb4] sm:$0xf]
    %v1161 = vld [vmem:[#allocation8 + $0xb8] sm:$0xf]
    %v1162 = vld [vmem:[#allocation8 + $0xbc] sm:$0xf]
    %v1163 = vld [vmem:[%s6] sm:$0x1]
    %v1165 = vlaneseq
    %v1166 = vshrl.u32 %v1165, 7
    %v1167 = vsub.s32 0, %v1166
    %v1168 = vrot.slane %v1163, %v1167
    %v1218 = vunpack.c.l.b16 %v1115
    %v1219 = vunpack.c.l.b16 %v1116
    %v1220 = vunpack.c.l.b16 %v1117
    %v1221 = vunpack.c.l.b16 %v1118
    %v1222 = vunpack.c.l.b16 %v1119
    %v1223 = vunpack.c.l.b16 %v1120
    %v1224 = vunpack.c.l.b16 %v1121
    %v1225 = vunpack.c.l.b16 %v1122
    %v1226 = vunpack.c.l.b16 %v1123
    %v1227 = vunpack.c.l.b16 %v1124
    %v1228 = vunpack.c.l.b16 %v1125
    %v1229 = vunpack.c.l.b16 %v1126
    %v1230 = vunpack.c.l.b16 %v1127
    %v1231 = vunpack.c.l.b16 %v1128
    %v1232 = vunpack.c.l.b16 %v1129
    %v1233 = vunpack.c.l.b16 %v1130
    %v1234 = vunpack.c.l.b16 %v1131
    %v1235 = vunpack.c.l.b16 %v1132
    %v1236 = vunpack.c.l.b16 %v1133
    %v1237 = vunpack.c.l.b16 %v1134
    %v1238 = vunpack.c.l.b16 %v1135
    %v1239 = vunpack.c.l.b16 %v1136
    %v1240 = vunpack.c.l.b16 %v1137
    %v1241 = vunpack.c.l.b16 %v1138
    %v1242 = vunpack.c.l.b16 %v1139
    %v1243 = vunpack.c.l.b16 %v1140
    %v1244 = vunpack.c.l.b16 %v1141
    %v1245 = vunpack.c.l.b16 %v1142
    %v1246 = vunpack.c.l.b16 %v1143
    %v1247 = vunpack.c.l.b16 %v1144
    %v1248 = vunpack.c.l.b16 %v1145
    %v1249 = vunpack.c.l.b16 %v1146
    %v1250 = vunpack.c.l.b16 %v1147
    %v1251 = vunpack.c.l.b16 %v1148
    %v1252 = vunpack.c.l.b16 %v1149
    %v1253 = vunpack.c.l.b16 %v1150
    %v1254 = vunpack.c.l.b16 %v1151
    %v1255 = vunpack.c.l.b16 %v1152
    %v1256 = vunpack.c.l.b16 %v1153
    %v1257 = vunpack.c.l.b16 %v1154
    %v1258 = vunpack.c.l.b16 %v1155
    %v1259 = vunpack.c.l.b16 %v1156
    %v1260 = vunpack.c.l.b16 %v1157
    %v1261 = vunpack.c.l.b16 %v1158
    %v1262 = vunpack.c.l.b16 %v1159
    %v1263 = vunpack.c.l.b16 %v1160
    %v1264 = vunpack.c.l.b16 %v1161
    %v1265 = vunpack.c.l.b16 %v1162
    %v1266 = vpack.c.b16 %v1219, %v1218
    %v1267 = vpack.c.b16 %v1221, %v1220
    %v1268 = vpack.c.b16 %v1223, %v1222
    %v1269 = vpack.c.b16 %v1225, %v1224
    %v1270 = vpack.c.b16 %v1227, %v1226
    %v1271 = vpack.c.b16 %v1229, %v1228
    %v1272 = vpack.c.b16 %v1231, %v1230
    %v1273 = vpack.c.b16 %v1233, %v1232
    %v1274 = vpack.c.b16 %v1235, %v1234
    %v1275 = vpack.c.b16 %v1237, %v1236
    %v1276 = vpack.c.b16 %v1239, %v1238
    %v1277 = vpack.c.b16 %v1241, %v1240
    %v1278 = vpack.c.b16 %v1243, %v1242
    %v1279 = vpack.c.b16 %v1245, %v1244
    %v1280 = vpack.c.b16 %v1247, %v1246
    %v1281 = vpack.c.b16 %v1249, %v1248
    %v1282 = vpack.c.b16 %v1251, %v1250
    %v1283 = vpack.c.b16 %v1253, %v1252
    %v1284 = vpack.c.b16 %v1255, %v1254
    %v1285 = vpack.c.b16 %v1257, %v1256
    %v1286 = vpack.c.b16 %v1259, %v1258
    %v1287 = vpack.c.b16 %v1261, %v1260
    %v1288 = vpack.c.b16 %v1263, %v1262
    %v1289 = vpack.c.b16 %v1265, %v1264
    %1314 = vmatprep.subr.bf16.mxu0 0
    %1315 = vmatpush1.bf16.msra.mxu0 %v1266
    %1316 = vmatprep.subr.bf16.mxu0 0
    %1317 = vmatpush1.bf16.msra.mxu0 %v1267
    %1318 = vmatprep.subr.bf16.mxu0 0
    %1319 = vmatpush1.bf16.msra.mxu0 %v1268
    %1320 = vmatprep.subr.bf16.mxu0 0
    %1321 = vmatpush1.bf16.msra.mxu0 %v1269
    %1322 = vmatprep.subr.bf16.mxu0 0
    %1323 = vmatpush1.bf16.msra.mxu0 %v1270
    %1324 = vmatprep.subr.bf16.mxu0 0
    %1325 = vmatpush1.bf16.msra.mxu0 %v1271
    %1326 = vmatprep.subr.bf16.mxu0 0
    %1327 = vmatpush1.bf16.msra.mxu0 %v1272
    %1328 = vmatprep.subr.bf16.mxu0 0
    %1329 = vmatpush1.bf16.msra.mxu0 %v1273
    %1330 = vmatprep.subr.bf16.mxu0 0
    %1331 = vmatpush1.bf16.msra.mxu0 %v1274
    %1332 = vmatprep.subr.bf16.mxu0 0
    %1333 = vmatpush1.bf16.msra.mxu0 %v1275
    %1334 = vmatprep.subr.bf16.mxu0 0
    %1335 = vmatpush1.bf16.msra.mxu0 %v1276
    %1336 = vmatprep.subr.bf16.mxu0 0
    %1337 = vmatpush1.bf16.msra.mxu0 %v1277
    %1338 = vmatprep.subr.bf16.mxu0 0
    %1339 = vmatpush1.bf16.msra.mxu0 %v1278
    %1340 = vmatprep.subr.bf16.mxu0 0
    %1341 = vmatpush1.bf16.msra.mxu0 %v1279
    %1342 = vmatprep.subr.bf16.mxu0 0
    %1343 = vmatpush1.bf16.msra.mxu0 %v1280
    %1344 = vmatprep.subr.bf16.mxu0 0
    %1345 = vmatpush1.bf16.msra.mxu0 %v1281
    %1346 = vmatprep.mubr.bf16.mxu0 %v1113
    %1347 = vmatmul.mubr.bf16.gmra.mrb[0].mxu0 %v1112
    %v1348 = vpop.f32.mrb[0].mxu0
    %v1349 = vadd.f32 %v1168, %v1348
    %v1350 = vpop.f32.mrb[0].mxu0
    %v1351 = vpop.f32.mrb[0].mxu0
    %v1352 = vpop.f32.mrb[0].mxu0
    %1353 = vdwg.mxu0
    %1354 = vmatprep.subr.bf16.mxu0 0
    %1355 = vmatpush1.bf16.msra.mxu0 %v1282
    %1356 = vmatprep.subr.bf16.mxu0 0
    %1357 = vmatpush1.bf16.msra.mxu0 %v1283
    %1358 = vmatprep.subr.bf16.mxu0 0
    %1359 = vmatpush1.bf16.msra.mxu0 %v1284
    %1360 = vmatprep.subr.bf16.mxu0 0
    %1361 = vmatpush1.bf16.msra.mxu0 %v1285
    %1362 = vmatprep.subr.bf16.mxu0 0
    %1363 = vmatpush1.bf16.msra.mxu0 %v1286
    %1364 = vmatprep.subr.bf16.mxu0 0
    %1365 = vmatpush1.bf16.msra.mxu0 %v1287
    %1366 = vmatprep.subr.bf16.mxu0 0
    %1367 = vmatpush1.bf16.msra.mxu0 %v1288
    %1368 = vmatprep.subr.bf16.mxu0 0
    %1369 = vmatpush1.bf16.msra.mxu0 %v1289
    %1370 = vmatprep.subr.bf16.mxu0 0
    %1371 = vmatpush1.bf16.msra.mxu0 0
    %1372 = vmatprep.subr.bf16.mxu0 0
    %1373 = vmatpush1.bf16.msra.mxu0 0
    %1374 = vmatprep.subr.bf16.mxu0 0
    %1375 = vmatpush1.bf16.msra.mxu0 0
    %1376 = vmatprep.subr.bf16.mxu0 0
    %1377 = vmatpush1.bf16.msra.mxu0 0
    %1378 = vmatprep.subr.bf16.mxu0 0
    %1379 = vmatpush1.bf16.msra.mxu0 0
    %1380 = vmatprep.subr.bf16.mxu0 0
    %1381 = vmatpush1.bf16.msra.mxu0 0
    %1382 = vmatprep.subr.bf16.mxu0 0
    %1383 = vmatpush1.bf16.msra.mxu0 0
    %1384 = vmatprep.subr.bf16.mxu0 0
    %1385 = vmatpush1.bf16.msra.mxu0 0
    %1386 = vmatprep.mubr.bf16.mxu0 0
    %1387 = vmatmul.mubr.bf16.gmra.mrb[0].mxu0 %v1114
    %v1388 = vpop.f32.mrb[0].mxu0
    %v1389 = vadd.f32 %v1349, %v1388
    %v1390 = vpop.f32.mrb[0].mxu0
    %v1391 = vpop.f32.mrb[0].mxu0
    %v1392 = vpop.f32.mrb[0].mxu0
    %1393 = vdwg.mxu0
    %v1394 = vtanh.pop %v1389
    %1395 = vst [vmem:[#allocation10] sm:$0xff] %v1394
    // Predicated region
    $region46: #{tpu_custom_call.1} parent=1 // pred_check
      _
    $region47: #{tpu_custom_call.1} parent=1 // pred_check_branch
      %1397 = sbr.rel (0) target = $region49
    $region48: #{tpu_custom_call.1} parent=1 // pred_region
      %s1399 = ssub.s32 128, 128
      %1400 = vsyncadd [#allocation4], %s1399
      %s1402 = sshll.u32 [#allocation10], 4
      %s1403 = int_to_ptr.vmem [resolvable:$true] %s1402
      %1405 = dma.vmem_to_hbm [thread:$0]  %s1403, 128, %s7, [#allocation4]
    $region49: #{tpu_custom_call.1} parent=1 // pred_fallthru
      _
    // Predicated region
    $region50: #{tpu_custom_call.1} parent=1 // pred_check
      _
    $region51: #{tpu_custom_call.1} parent=1 // pred_check_branch
      %1407 = sbr.rel (0) target = $region53
    $region52: #{tpu_custom_call.1} parent=1 // pred_region
      %1408 = dma.done [#allocation4], 128
    $region53: #{tpu_custom_call.1} parent=1 // pred_fallthru
      _
    %1409 = vsyncpa [#allocation3], 1
    %1410 = vsyncpa [#allocation6], 1
    %1411 = vsyncpa [#allocation9], 1
    %1412 = vsyncpa [#allocation4], 1

// kernel: tpu_custom_call.1
$region0: #{tpu_custom_call.1}
  #allocation0 [shape = 'u32[]', space=smem, size = 0x4, offset = 0x4, fixed_abs, tag = 'smem constant byte address 0x4 - core index']
  #allocation1 [shape = 'u32[144,128]{1,0:T(1,128)}', space=vmem, size = 0x12000, scoped, tag = 'internal scratch']
  %s0 = inlined_call_operand.hbm [shape: bf16[8,16], index: 0, kind: input, shape index: {}]
  %s1 = inlined_call_operand.hbm [shape: bf16[16,512], index: 1, kind: input, shape index: {}]
  %s2 = inlined_call_operand.vmem [shape: bf16[1,512], index: 2, kind: input, shape index: {}]
  %s3 = inlined_call_operand.hbm [shape: bf16[512,384], index: 3, kind: input, shape index: {}]
  %s4 = inlined_call_operand.vmem [shape: bf16[1,384], index: 4, kind: input, shape index: {}]
  %s5 = inlined_call_operand.hbm [shape: bf16[384,128], index: 5, kind: input, shape index: {}]
  %s6 = inlined_call_operand.vmem [shape: f32[1,128], index: 6, kind: input, shape index: {}]
  %s7 = inlined_call_operand.hbm [shape: f32[8,128], index: 7, kind: output, shape index: {}]
  %s8 = sld [smem:[#allocation0]]
  $region54: #{tpu_custom_call.1} parent=0
    _
  %s10 = ssub.s32 1, %s8
  %s11 = scalar_select 0, %s10, %s8
  $region1: #{tpu_custom_call.1} parent=0
    #allocation2 [shape = 'u8[2048]{0}', space=vmem, size = 0x800, scoped, tag = 'input window, operand 0, single buffered']
    #allocation3 [shape = 's32[1]{0}', space=sflag, size = 0x4, scoped, tag = 'scoped memory for tpu_custom_call.1']
    #allocation4 [shape = 's32[1]{0}', space=sflag, size = 0x4, scoped, tag = 'scoped memory for tpu_custom_call.1']
    #allocation5 [shape = 'u8[16384]{0}', space=vmem, size = 0x4000, scoped, tag = 'input window, operand 1, single buffered']
    #allocation6 [shape = 's32[1]{0}', space=sflag, size = 0x4, scoped, tag = 'scoped memory for tpu_custom_call.1']
    #allocation7 [shape = 'u8[393216]{0}', space=vmem, size = 0x60000, scoped, tag = 'input window, operand 3, single buffered']
    #allocation8 [shape = 'u8[98304]{0}', space=vmem, size = 0x18000, scoped, tag = 'input window, operand 5, single buffered']
    #allocation9 [shape = 's32[1]{0}', space=sflag, size = 0x4, scoped, tag = 'scoped memory for tpu_custom_call.1']
    #allocation10 [shape = 'u8[4096]{0}', space=vmem, size = 0x1000, scoped, tag = 'output window, operand 0, single buffered']
    %12 = vsyncpa [#allocation3], 0
    %13 = vsyncpa [#allocation6], 0
    %14 = vsyncpa [#allocation9], 0
    %15 = vsyncpa [#allocation4], 0
    // Predicated region
    $region2: #{tpu_custom_call.1} parent=1 // pred_check
      _
    $region3: #{tpu_custom_call.1} parent=1 // pred_check_branch
      %17 = sbr.rel (0) target = $region5
    $region4: #{tpu_custom_call.1} parent=1 // pred_region
      %s19 = ssub.s32 64, 64
      %20 = vsyncadd [#allocation3], %s19
      %s22 = sshll.u32 [#allocation2], 4
      %s23 = int_to_ptr.vmem [resolvable:$true] %s22
      %25 = dma.hbm_to_vmem [thread:$0]  %s0, 64, %s23, [#allocation3]
    $region5: #{tpu_custom_call.1} parent=1 // pred_fallthru
      _
    // Predicated region
    $region6: #{tpu_custom_call.1} parent=1 // pred_check
      _
    $region7: #{tpu_custom_call.1} parent=1 // pred_check_branch
      %27 = sbr.rel (0) target = $region9
    $region8: #{tpu_custom_call.1} parent=1 // pred_region
      %s29 = ssub.s32 512, 512
      %30 = vsyncadd [#allocation6], %s29
      %s31 = sshll.u32 [#allocation5], 4
      %s32 = int_to_ptr.vmem [resolvable:$true] %s31
      %37 = dma.hbm_to_vmem [thread:$0]  %s1, 512, %s32, [#allocation6], 256, 256, 16
    $region9: #{tpu_custom_call.1} parent=1 // pred_fallthru
      _
    // Predicated region
    $region10: #{tpu_custom_call.1} parent=1 // pred_check
      _
    $region11: #{tpu_custom_call.1} parent=1 // pred_check_branch
      %39 = sbr.rel (0) target = $region13
    $region12: #{tpu_custom_call.1} parent=1 // pred_region
      _
    $region13: #{tpu_custom_call.1} parent=1 // pred_fallthru
      _
    // Predicated region
    $region14: #{tpu_custom_call.1} parent=1 // pred_check
      _
    $region15: #{tpu_custom_call.1} parent=1 // pred_check_branch
      %41 = sbr.rel (0) target = $region17
    $region16: #{tpu_custom_call.1} parent=1 // pred_region
      %s43 = ssub.s32 12288, 12288
      %44 = vsyncadd [#allocation6], %s43
      %s45 = sshll.u32 [#allocation7], 4
      %s46 = int_to_ptr.vmem [resolvable:$true] %s45
      %51 = dma.hbm_to_vmem [thread:$0]  %s3, 12288, %s46, [#allocation6], 192, 192, 12
    $region17: #{tpu_custom_call.1} parent=1 // pred_fallthru
      _
    // Predicated region
    $region18: #{tpu_custom_call.1} parent=1 // pred_check
      _
    $region19: #{tpu_custom_call.1} parent=1 // pred_check_branch
      %53 = sbr.rel (0) target = $region21
    $region20: #{tpu_custom_call.1} parent=1 // pred_region
      _
    $region21: #{tpu_custom_call.1} parent=1 // pred_fallthru
      _
    // Predicated region
    $region22: #{tpu_custom_call.1} parent=1 // pred_check
      _
    $region23: #{tpu_custom_call.1} parent=1 // pred_check_branch
      %55 = sbr.rel (0) target = $region25
    $region24: #{tpu_custom_call.1} parent=1 // pred_region
      %s57 = ssub.s32 3072, 3072
      %58 = vsyncadd [#allocation9], %s57
      %s59 = sshll.u32 [#allocation8], 4
      %s60 = int_to_ptr.vmem [resolvable:$true] %s59
      %65 = dma.hbm_to_vmem [thread:$0]  %s5, 3072, %s60, [#allocation9], 64, 64, 4
    $region25: #{tpu_custom_call.1} parent=1 // pred_fallthru
      _
    // Predicated region
    $region26: #{tpu_custom_call.1} parent=1 // pred_check
      _
    $region27: #{tpu_custom_call.1} parent=1 // pred_check_branch
      %67 = sbr.rel (0) target = $region29
    $region28: #{tpu_custom_call.1} parent=1 // pred_region
      _
    $region29: #{tpu_custom_call.1} parent=1 // pred_fallthru
      _
    // Predicated region
    $region30: #{tpu_custom_call.1} parent=1 // pred_check
      _
    $region31: #{tpu_custom_call.1} parent=1 // pred_check_branch
      %69 = sbr.rel (0) target = $region33
    $region32: #{tpu_custom_call.1} parent=1 // pred_region
      %70 = dma.done [#allocation3], 64
    $region33: #{tpu_custom_call.1} parent=1 // pred_fallthru
      _
    // Predicated region
    $region34: #{tpu_custom_call.1} parent=1 // pred_check
      _
    $region35: #{tpu_custom_call.1} parent=1 // pred_check_branch
      %72 = sbr.rel (0) target = $region37
    $region36: #{tpu_custom_call.1} parent=1 // pred_region
      %73 = dma.done [#allocation6], 512
    $region37: #{tpu_custom_call.1} parent=1 // pred_fallthru
      _
    // Predicated region
    $region38: #{tpu_custom_call.1} parent=1 // pred_check
      _
    $region39: #{tpu_custom_call.1} parent=1 // pred_check_branch
      %75 = sbr.rel (0) target = $region41
    $region40: #{tpu_custom_call.1} parent=1 // pred_region
      %76 = dma.done [#allocation6], 12288
    $region41: #{tpu_custom_call.1} parent=1 // pred_fallthru
      _
    // Predicated region
    $region42: #{tpu_custom_call.1} parent=1 // pred_check
      _
    $region43: #{tpu_custom_call.1} parent=1 // pred_check_branch
      %78 = sbr.rel (0) target = $region45
    $region44: #{tpu_custom_call.1} parent=1 // pred_region
      %79 = dma.done [#allocation9], 3072
    $region45: #{tpu_custom_call.1} parent=1 // pred_fallthru
      _
    %v81 = vld [vmem:[#allocation2] sm:$0xf]
    %v82 = vld [vmem:[#allocation5] sm:$0xff]
    %v83 = vld [vmem:[#allocation5 + $0x8] sm:$0xff]
    %v84 = vld [vmem:[#allocation5 + $0x10] sm:$0xff]
    %v85 = vld [vmem:[#allocation5 + $0x18] sm:$0xff]
    %v90 = vunpack.c.l.b16 %v82
    %v91 = vunpack.c.h.b16 %v82
    %v92 = vunpack.c.l.b16 %v83
    %v93 = vunpack.c.h.b16 %v83
    %v94 = vunpack.c.l.b16 %v84
    %v95 = vunpack.c.h.b16 %v84
    %v96 = vunpack.c.l.b16 %v85
    %v97 = vunpack.c.h.b16 %v85
    %v98 = vpack.c.b16 %v94, %v90
    %v99 = vpack.c.b16 %v95, %v91
    %v100 = vpack.c.b16 %v96, %v92
    %v101 = vpack.c.b16 %v97, %v93
    %vm106 = vcmask 130048
    %v108 = vsel %vm106, %v81, 0
    %110 = vmatprep.subr.bf16.mxu0 %v99
    %111 = vmatpush1.bf16.msra.mxu0 %v98
    %112 = vmatprep.subr.bf16.mxu0 0
    %113 = vmatpush1.bf16.msra.mxu0 0
    %114 = vmatprep.subr.bf16.mxu0 0
    %115 = vmatpush1.bf16.msra.mxu0 0
    %116 = vmatprep.subr.bf16.mxu0 0
    %117 = vmatpush1.bf16.msra.mxu0 0
    %118 = vmatprep.subr.bf16.mxu0 0
    %119 = vmatpush1.bf16.msra.mxu0 0
    %120 = vmatprep.subr.bf16.mxu0 0
    %121 = vmatpush1.bf16.msra.mxu0 0
    %122 = vmatprep.subr.bf16.mxu0 0
    %123 = vmatpush1.bf16.msra.mxu0 0
    %124 = vmatprep.subr.bf16.mxu0 0
    %125 = vmatpush1.bf16.msra.mxu0 0
    %126 = vmatprep.subr.bf16.mxu0 0
    %127 = vmatpush1.bf16.msra.mxu0 0
    %128 = vmatprep.subr.bf16.mxu0 0
    %129 = vmatpush1.bf16.msra.mxu0 0
    %130 = vmatprep.subr.bf16.mxu0 0
    %131 = vmatpush1.bf16.msra.mxu0 0
    %132 = vmatprep.subr.bf16.mxu0 0
    %133 = vmatpush1.bf16.msra.mxu0 0
    %134 = vmatprep.subr.bf16.mxu0 0
    %135 = vmatpush1.bf16.msra.mxu0 0
    %136 = vmatprep.subr.bf16.mxu0 0
    %137 = vmatpush1.bf16.msra.mxu0 0
    %138 = vmatprep.subr.bf16.mxu0 0
    %139 = vmatpush1.bf16.msra.mxu0 0
    %140 = vmatprep.subr.bf16.mxu0 0
    %141 = vmatpush1.bf16.msra.mxu0 0
    %142 = vmatprep.mubr.bf16.mxu0 0
    %143 = vmatmul.mubr.bf16.gmra.mrb[0].mxu0 %v108
    %v144 = vpop.f32.mrb[0].mxu0
    %v145 = vadd.f32 0.0, %v144
    %v146 = vpop.f32.mrb[0].mxu0
    %v147 = vadd.f32 0.0, %v146
    %v148 = vpop.f32.mrb[0].mxu0
    %v149 = vpop.f32.mrb[0].mxu0
    %150 = vdwg.mxu0
    %151 = vmatprep.subr.bf16.mxu0 %v101
    %152 = vmatpush1.bf16.msra.mxu0 %v100
    %153 = vmatprep.subr.bf16.mxu0 0
    %154 = vmatpush1.bf16.msra.mxu0 0
    %155 = vmatprep.subr.bf16.mxu0 0
    %156 = vmatpush1.bf16.msra.mxu0 0
    %157 = vmatprep.subr.bf16.mxu0 0
    %158 = vmatpush1.bf16.msra.mxu0 0
    %159 = vmatprep.subr.bf16.mxu0 0
    %160 = vmatpush1.bf16.msra.mxu0 0
    %161 = vmatprep.subr.bf16.mxu0 0
    %162 = vmatpush1.bf16.msra.mxu0 0
    %163 = vmatprep.subr.bf16.mxu0 0
    %164 = vmatpush1.bf16.msra.mxu0 0
    %165 = vmatprep.subr.bf16.mxu0 0
    %166 = vmatpush1.bf16.msra.mxu0 0
    %167 = vmatprep.subr.bf16.mxu0 0
    %168 = vmatpush1.bf16.msra.mxu0 0
    %169 = vmatprep.subr.bf16.mxu0 0
    %170 = vmatpush1.bf16.msra.mxu0 0
    %171 = vmatprep.subr.bf16.mxu0 0
    %172 = vmatpush1.bf16.msra.mxu0 0
    %173 = vmatprep.subr.bf16.mxu0 0
    %174 = vmatpush1.bf16.msra.mxu0 0
    %175 = vmatprep.subr.bf16.mxu0 0
    %176 = vmatpush1.bf16.msra.mxu0 0
    %177 = vmatprep.subr.bf16.mxu0 0
    %178 = vmatpush1.bf16.msra.mxu0 0
    %179 = vmatprep.subr.bf16.mxu0 0
    %180 = vmatpush1.bf16.msra.mxu0 0
    %181 = vmatprep.subr.bf16.mxu0 0
    %182 = vmatpush1.bf16.msra.mxu0 0
    %183 = vmatprep.mubr.bf16.mxu0 0
    %184 = vmatmul.mubr.bf16.gmra.mrb[0].mxu0 %v108
    %v185 = vpop.f32.mrb[0].mxu0
    %v186 = vadd.f32 0.0, %v185
    %v187 = vpop.f32.mrb[0].mxu0
    %v188 = vadd.f32 0.0, %v187
    %v189 = vpop.f32.mrb[0].mxu0
    %v190 = vpop.f32.mrb[0].mxu0
    %191 = vdwg.mxu0
    %v192 = vpack.c.bf16 %v145, %v145
    %v193 = vpack.c.bf16 %v147, %v147
    %v194 = vpack.c.bf16 %v186, %v186
    %v195 = vpack.c.bf16 %v188, %v188
    %v196 = vld [vmem:[%s2] sm:$0xf]
    %v199 = vunpack.c.l.s4 1966171168
    %v200 = vunpack.c.0.s8 %v199
    %v201 = vlaneseq
    %v202 = vshrl.u32 %v201, 7
    %v203 = vsub.s32 %v200, %v202
    %v204 = vrot.slane %v196, %v203
    %v205 = vcombine.high %v204, %v204
    %v207 = vunpack.c.l.s4 1966171168
    %v208 = vunpack.c.0.s8 %v207
    %v209 = vlaneseq
    %v210 = vshrl.u32 %v209, 7
    %v211 = vsub.s32 %v208, %v210
    %v212 = vrot.slane %v204, %v211
    %v214 = vunpack.c.l.s4 1966171168
    %v215 = vunpack.c.0.s8 %v214
    %v216 = vlaneseq
    %v217 = vshrl.u32 %v216, 7
    %v218 = vsub.s32 %v215, %v217
    %v219 = vrot.slane %v205, %v218
    %v220 = vcombine.high %v212, %v212
    %v221 = vcombine.high %v219, %v219
    %v223 = vpack.i.b16 %v212, %v212
    %v225 = vlaneseq
    %v226 = vshrl.u32 %v225, 7
    %v227 = vsub.s32 0, %v226
    %v228 = vrot.slane %v223, %v227
    %v230 = vpack.i.b16 %v219, %v219
    %v232 = vlaneseq
    %v233 = vshrl.u32 %v232, 7
    %v234 = vsub.s32 0, %v233
    %v235 = vrot.slane %v230, %v234
    %v237 = vpack.i.b16 %v220, %v220
    %v239 = vlaneseq
    %v240 = vshrl.u32 %v239, 7
    %v241 = vsub.s32 0, %v240
    %v242 = vrot.slane %v237, %v241
    %v244 = vpack.i.b16 %v221, %v221
    %v246 = vlaneseq
    %v247 = vshrl.u32 %v246, 7
    %v248 = vsub.s32 0, %v247
    %v249 = vrot.slane %v244, %v248
    %v250 = vadd.bf16 %v192, %v228
    %v251 = vadd.bf16 %v193, %v235
    %v252 = vadd.bf16 %v194, %v242
    %v253 = vadd.bf16 %v195, %v249
    %v254 = vmax.bf16 %v250, 0
    %v255 = vmax.bf16 %v251, 0
    %v256 = vmax.bf16 %v252, 0
    %v257 = vmax.bf16 %v253, 0
    %v258 = vld [vmem:[#allocation7] sm:$0xff]
    %v259 = vld [vmem:[#allocation7 + $0x8] sm:$0xf]
    %v260 = vld [vmem:[#allocation7 + $0xc] sm:$0xff]
    %v261 = vld [vmem:[#allocation7 + $0x14] sm:$0xf]
    %v262 = vld [vmem:[#allocation7 + $0x18] sm:$0xff]
    %v263 = vld [vmem:[#allocation7 + $0x20] sm:$0xf]
    %v264 = vld [vmem:[#allocation7 + $0x24] sm:$0xff]
    %v265 = vld [vmem:[#allocation7 + $0x2c] sm:$0xf]
    %v266 = vld [vmem:[#allocation7 + $0x30] sm:$0xff]
    %v267 = vld [vmem:[#allocation7 + $0x38] sm:$0xf]
    %v268 = vld [vmem:[#allocation7 + $0x3c] sm:$0xff]
    %v269 = vld [vmem:[#allocation7 + $0x44] sm:$0xf]
    %v270 = vld [vmem:[#allocation7 + $0x48] sm:$0xff]
    %v271 = vld [vmem:[#allocation7 + $0x50] sm:$0xf]
    %v272 = vld [vmem:[#allocation7 + $0x54] sm:$0xff]
    %v273 = vld [vmem:[#allocation7 + $0x5c] sm:$0xf]
    %v274 = vld [vmem:[#allocation7 + $0x60] sm:$0xff]
    %v275 = vld [vmem:[#allocation7 + $0x68] sm:$0xf]
    %v276 = vld [vmem:[#allocation7 + $0x6c] sm:$0xff]
    %v277 = vld [vmem:[#allocation7 + $0x74] sm:$0xf]
    %v278 = vld [vmem:[#allocation7 + $0x78] sm:$0xff]
    %v279 = vld [vmem:[#allocation7 + $0x80] sm:$0xf]
    %v280 = vld [vmem:[#allocation7 + $0x84] sm:$0xff]
    %v281 = vld [vmem:[#allocation7 + $0x8c] sm:$0xf]
    %v282 = vld [vmem:[#allocation7 + $0x90] sm:$0xff]
    %v283 = vld [vmem:[#allocation7 + $0x98] sm:$0xf]
    %v284 = vld [vmem:[#allocation7 + $0x9c] sm:$0xff]
    %v285 = vld [vmem:[#allocation7 + $0xa4] sm:$0xf]
    %v286 = vld [vmem:[#allocation7 + $0xa8] sm:$0xff]
    %v287 = vld [vmem:[#allocation7 + $0xb0] sm:$0xf]
    %v288 = vld [vmem:[#allocation7 + $0xb4] sm:$0xff]
    %v289 = vld [vmem:[#allocation7 + $0xbc] sm:$0xf]
    %v290 = vld [vmem:[#allocation7 + $0xc0] sm:$0xff]
    %v291 = vld [vmem:[#allocation7 + $0xc8] sm:$0xf]
    %v292 = vld [vmem:[#allocation7 + $0xcc] sm:$0xff]
    %v293 = vld [vmem:[#allocation7 + $0xd4] sm:$0xf]
    %v294 = vld [vmem:[#allocation7 + $0xd8] sm:$0xff]
    %v295 = vld [vmem:[#allocation7 + $0xe0] sm:$0xf]
    %v296 = vld [vmem:[#allocation7 + $0xe4] sm:$0xff]
    %v297 = vld [vmem:[#allocation7 + $0xec] sm:$0xf]
    %v298 = vld [vmem:[#allocation7 + $0xf0] sm:$0xff]
    %v299 = vld [vmem:[#allocation7 + $0xf8] sm:$0xf]
    %v300 = vld [vmem:[#allocation7 + $0xfc] sm:$0xff]
    %v301 = vld [vmem:[#allocation7 + $0x104] sm:$0xf]
    %v302 = vld [vmem:[#allocation7 + $0x108] sm:$0xff]
    %v303 = vld [vmem:[#allocation7 + $0x110] sm:$0xf]
    %v304 = vld [vmem:[#allocation7 + $0x114] sm:$0xff]
    %v305 = vld [vmem:[#allocation7 + $0x11c] sm:$0xf]
    %v306 = vld [vmem:[#allocation7 + $0x120] sm:$0xff]
    %v307 = vld [vmem:[#allocation7 + $0x128] sm:$0xf]
    %v308 = vld [vmem:[#allocation7 + $0x12c] sm:$0xff]
    %v309 = vld [vmem:[#allocation7 + $0x134] sm:$0xf]
    %v310 = vld [vmem:[#allocation7 + $0x138] sm:$0xff]
    %v311 = vld [vmem:[#allocation7 + $0x140] sm:$0xf]
    %v312 = vld [vmem:[#allocation7 + $0x144] sm:$0xff]
    %v313 = vld [vmem:[#allocation7 + $0x14c] sm:$0xf]
    %v314 = vld [vmem:[#allocation7 + $0x150] sm:$0xff]
    %v315 = vld [vmem:[#allocation7 + $0x158] sm:$0xf]
    %v316 = vld [vmem:[#allocation7 + $0x15c] sm:$0xff]
    %v317 = vld [vmem:[#allocation7 + $0x164] sm:$0xf]
    %v318 = vld [vmem:[#allocation7 + $0x168] sm:$0xff]
    %v319 = vld [vmem:[#allocation7 + $0x170] sm:$0xf]
    %v320 = vld [vmem:[#allocation7 + $0x174] sm:$0xff]
    %v321 = vld [vmem:[#allocation7 + $0x17c] sm:$0xf]
    %v322 = vld [vmem:[#allocation7 + $0x180] sm:$0xff]
    %v323 = vld [vmem:[#allocation7 + $0x188] sm:$0xf]
    %v324 = vld [vmem:[#allocation7 + $0x18c] sm:$0xff]
    %v325 = vld [vmem:[#allocation7 + $0x194] sm:$0xf]
    %v326 = vld [vmem:[#allocation7 + $0x198] sm:$0xff]
    %v327 = vld [vmem:[#allocation7 + $0x1a0] sm:$0xf]
    %v328 = vld [vmem:[#allocation7 + $0x1a4] sm:$0xff]
    %v329 = vld [vmem:[#allocation7 + $0x1ac] sm:$0xf]
    %v330 = vld [vmem:[#allocation7 + $0x1b0] sm:$0xff]
    %v331 = vld [vmem:[#allocation7 + $0x1b8] sm:$0xf]
    %v332 = vld [vmem:[#allocation7 + $0x1bc] sm:$0xff]
    %v333 = vld [vmem:[#allocation7 + $0x1c4] sm:$0xf]
    %v334 = vld [vmem:[#allocation7 + $0x1c8] sm:$0xff]
    %v335 = vld [vmem:[#allocation7 + $0x1d0] sm:$0xf]
    %v336 = vld [vmem:[#allocation7 + $0x1d4] sm:$0xff]
    %v337 = vld [vmem:[#allocation7 + $0x1dc] sm:$0xf]
    %v338 = vld [vmem:[#allocation7 + $0x1e0] sm:$0xff]
    %v339 = vld [vmem:[#allocation7 + $0x1e8] sm:$0xf]
    %v340 = vld [vmem:[#allocation7 + $0x1ec] sm:$0xff]
    %v341 = vld [vmem:[#allocation7 + $0x1f4] sm:$0xf]
    %v342 = vld [vmem:[#allocation7 + $0x1f8] sm:$0xff]
    %v343 = vld [vmem:[#allocation7 + $0x200] sm:$0xf]
    %v344 = vld [vmem:[#allocation7 + $0x204] sm:$0xff]
    %v345 = vld [vmem:[#allocation7 + $0x20c] sm:$0xf]
    %v346 = vld [vmem:[#allocation7 + $0x210] sm:$0xff]
    %v347 = vld [vmem:[#allocation7 + $0x218] sm:$0xf]
    %v348 = vld [vmem:[#allocation7 + $0x21c] sm:$0xff]
    %v349 = vld [vmem:[#allocation7 + $0x224] sm:$0xf]
    %v350 = vld [vmem:[#allocation7 + $0x228] sm:$0xff]
    %v351 = vld [vmem:[#allocation7 + $0x230] sm:$0xf]
    %v352 = vld [vmem:[#allocation7 + $0x234] sm:$0xff]
    %v353 = vld [vmem:[#allocation7 + $0x23c] sm:$0xf]
    %v354 = vld [vmem:[#allocation7 + $0x240] sm:$0xff]
    %v355 = vld [vmem:[#allocation7 + $0x248] sm:$0xf]
    %v356 = vld [vmem:[#allocation7 + $0x24c] sm:$0xff]
    %v357 = vld [vmem:[#allocation7 + $0x254] sm:$0xf]
    %v358 = vld [vmem:[#allocation7 + $0x258] sm:$0xff]
    %v359 = vld [vmem:[#allocation7 + $0x260] sm:$0xf]
    %v360 = vld [vmem:[#allocation7 + $0x264] sm:$0xff]
    %v361 = vld [vmem:[#allocation7 + $0x26c] sm:$0xf]
    %v362 = vld [vmem:[#allocation7 + $0x270] sm:$0xff]
    %v363 = vld [vmem:[#allocation7 + $0x278] sm:$0xf]
    %v364 = vld [vmem:[#allocation7 + $0x27c] sm:$0xff]
    %v365 = vld [vmem:[#allocation7 + $0x284] sm:$0xf]
    %v366 = vld [vmem:[#allocation7 + $0x288] sm:$0xff]
    %v367 = vld [vmem:[#allocation7 + $0x290] sm:$0xf]
    %v368 = vld [vmem:[#allocation7 + $0x294] sm:$0xff]
    %v369 = vld [vmem:[#allocation7 + $0x29c] sm:$0xf]
    %v370 = vld [vmem:[#allocation7 + $0x2a0] sm:$0xff]
    %v371 = vld [vmem:[#allocation7 + $0x2a8] sm:$0xf]
    %v372 = vld [vmem:[#allocation7 + $0x2ac] sm:$0xff]
    %v373 = vld [vmem:[#allocation7 + $0x2b4] sm:$0xf]
    %v374 = vld [vmem:[#allocation7 + $0x2b8] sm:$0xff]
    %v375 = vld [vmem:[#allocation7 + $0x2c0] sm:$0xf]
    %v376 = vld [vmem:[#allocation7 + $0x2c4] sm:$0xff]
    %v377 = vld [vmem:[#allocation7 + $0x2cc] sm:$0xf]
    %v378 = vld [vmem:[#allocation7 + $0x2d0] sm:$0xff]
    %v379 = vld [vmem:[#allocation7 + $0x2d8] sm:$0xf]
    %v380 = vld [vmem:[#allocation7 + $0x2dc] sm:$0xff]
    %v381 = vld [vmem:[#allocation7 + $0x2e4] sm:$0xf]
    %v382 = vld [vmem:[#allocation7 + $0x2e8] sm:$0xff]
    %v383 = vld [vmem:[#allocation7 + $0x2f0] sm:$0xf]
    %v384 = vld [vmem:[#allocation7 + $0x2f4] sm:$0xff]
    %v385 = vld [vmem:[#allocation7 + $0x2fc] sm:$0xf]
    %v514 = vunpack.c.l.b16 %v258
    %v515 = vunpack.c.h.b16 %v258
    %v516 = vunpack.c.l.b16 %v259
    %v517 = vunpack.c.l.b16 %v260
    %v518 = vunpack.c.h.b16 %v260
    %v519 = vunpack.c.l.b16 %v261
    %v520 = vunpack.c.l.b16 %v262
    %v521 = vunpack.c.h.b16 %v262
    %v522 = vunpack.c.l.b16 %v263
    %v523 = vunpack.c.l.b16 %v264
    %v524 = vunpack.c.h.b16 %v264
    %v525 = vunpack.c.l.b16 %v265
    %v526 = vunpack.c.l.b16 %v266
    %v527 = vunpack.c.h.b16 %v266
    %v528 = vunpack.c.l.b16 %v267
    %v529 = vunpack.c.l.b16 %v268
    %v530 = vunpack.c.h.b16 %v268
    %v531 = vunpack.c.l.b16 %v269
    %v532 = vunpack.c.l.b16 %v270
    %v533 = vunpack.c.h.b16 %v270
    %v534 = vunpack.c.l.b16 %v271
    %v535 = vunpack.c.l.b16 %v272
    %v536 = vunpack.c.h.b16 %v272
    %v537 = vunpack.c.l.b16 %v273
    %v538 = vunpack.c.l.b16 %v274
    %v539 = vunpack.c.h.b16 %v274
    %v540 = vunpack.c.l.b16 %v275
    %v541 = vunpack.c.l.b16 %v276
    %v542 = vunpack.c.h.b16 %v276
    %v543 = vunpack.c.l.b16 %v277
    %v544 = vunpack.c.l.b16 %v278
    %v545 = vunpack.c.h.b16 %v278
    %v546 = vunpack.c.l.b16 %v279
    %v547 = vunpack.c.l.b16 %v280
    %v548 = vunpack.c.h.b16 %v280
    %v549 = vunpack.c.l.b16 %v281
    %v550 = vunpack.c.l.b16 %v282
    %v551 = vunpack.c.h.b16 %v282
    %v552 = vunpack.c.l.b16 %v283
    %v553 = vunpack.c.l.b16 %v284
    %v554 = vunpack.c.h.b16 %v284
    %v555 = vunpack.c.l.b16 %v285
    %v556 = vunpack.c.l.b16 %v286
    %v557 = vunpack.c.h.b16 %v286
    %v558 = vunpack.c.l.b16 %v287
    %v559 = vunpack.c.l.b16 %v288
    %v560 = vunpack.c.h.b16 %v288
    %v561 = vunpack.c.l.b16 %v289
    %v562 = vunpack.c.l.b16 %v290
    %v563 = vunpack.c.h.b16 %v290
    %v564 = vunpack.c.l.b16 %v291
    %v565 = vunpack.c.l.b16 %v292
    %v566 = vunpack.c.h.b16 %v292
    %v567 = vunpack.c.l.b16 %v293
    %v568 = vunpack.c.l.b16 %v294
    %v569 = vunpack.c.h.b16 %v294
    %v570 = vunpack.c.l.b16 %v295
    %v571 = vunpack.c.l.b16 %v296
    %v572 = vunpack.c.h.b16 %v296
    %v573 = vunpack.c.l.b16 %v297
    %v574 = vunpack.c.l.b16 %v298
    %v575 = vunpack.c.h.b16 %v298
    %v576 = vunpack.c.l.b16 %v299
    %v577 = vunpack.c.l.b16 %v300
    %v578 = vunpack.c.h.b16 %v300
    %v579 = vunpack.c.l.b16 %v301
    %v580 = vunpack.c.l.b16 %v302
    %v581 = vunpack.c.h.b16 %v302
    %v582 = vunpack.c.l.b16 %v303
    %v583 = vunpack.c.l.b16 %v304
    %v584 = vunpack.c.h.b16 %v304
    %v585 = vunpack.c.l.b16 %v305
    %v586 = vunpack.c.l.b16 %v306
    %v587 = vunpack.c.h.b16 %v306
    %v588 = vunpack.c.l.b16 %v307
    %v589 = vunpack.c.l.b16 %v308
    %v590 = vunpack.c.h.b16 %v308
    %v591 = vunpack.c.l.b16 %v309
    %v592 = vunpack.c.l.b16 %v310
    %v593 = vunpack.c.h.b16 %v310
    %v594 = vunpack.c.l.b16 %v311
    %v595 = vunpack.c.l.b16 %v312
    %v596 = vunpack.c.h.b16 %v312
    %v597 = vunpack.c.l.b16 %v313
    %v598 = vunpack.c.l.b16 %v314
    %v599 = vunpack.c.h.b16 %v314
    %v600 = vunpack.c.l.b16 %v315
    %v601 = vunpack.c.l.b16 %v316
    %v602 = vunpack.c.h.b16 %v316
    %v603 = vunpack.c.l.b16 %v317
    %v604 = vunpack.c.l.b16 %v318
    %v605 = vunpack.c.h.b16 %v318
    %v606 = vunpack.c.l.b16 %v319
    %v607 = vunpack.c.l.b16 %v320
    %v608 = vunpack.c.h.b16 %v320
    %v609 = vunpack.c.l.b16 %v321
    %v610 = vunpack.c.l.b16 %v322
    %v611 = vunpack.c.h.b16 %v322
    %v612 = vunpack.c.l.b16 %v323
    %v613 = vunpack.c.l.b16 %v324
    %v614 = vunpack.c.h.b16 %v324
    %v615 = vunpack.c.l.b16 %v325
    %v616 = vunpack.c.l.b16 %v326
    %v617 = vunpack.c.h.b16 %v326
    %v618 = vunpack.c.l.b16 %v327
    %v619 = vunpack.c.l.b16 %v328
    %v620 = vunpack.c.h.b16 %v328
    %v621 = vunpack.c.l.b16 %v329
    %v622 = vunpack.c.l.b16 %v330
    %v623 = vunpack.c.h.b16 %v330
    %v624 = vunpack.c.l.b16 %v331
    %v625 = vunpack.c.l.b16 %v332
    %v626 = vunpack.c.h.b16 %v332
    %v627 = vunpack.c.l.b16 %v333
    %v628 = vunpack.c.l.b16 %v334
    %v629 = vunpack.c.h.b16 %v334
    %v630 = vunpack.c.l.b16 %v335
    %v631 = vunpack.c.l.b16 %v336
    %v632 = vunpack.c.h.b16 %v336
    %v633 = vunpack.c.l.b16 %v337
    %v634 = vunpack.c.l.b16 %v338
    %v635 = vunpack.c.h.b16 %v338
    %v636 = vunpack.c.l.b16 %v339
    %v637 = vunpack.c.l.b16 %v340
    %v638 = vunpack.c.h.b16 %v340
    %v639 = vunpack.c.l.b16 %v341
    %v640 = vunpack.c.l.b16 %v342
    %v641 = vunpack.c.h.b16 %v342
    %v642 = vunpack.c.l.b16 %v343
    %v643 = vunpack.c.l.b16 %v344
    %v644 = vunpack.c.h.b16 %v344
    %v645 = vunpack.c.l.b16 %v345
    %v646 = vunpack.c.l.b16 %v346
    %v647 = vunpack.c.h.b16 %v346
    %v648 = vunpack.c.l.b16 %v347
    %v649 = vunpack.c.l.b16 %v348
    %v650 = vunpack.c.h.b16 %v348
    %v651 = vunpack.c.l.b16 %v349
    %v652 = vunpack.c.l.b16 %v350
    %v653 = vunpack.c.h.b16 %v350
    %v654 = vunpack.c.l.b16 %v351
    %v655 = vunpack.c.l.b16 %v352
    %v656 = vunpack.c.h.b16 %v352
    %v657 = vunpack.c.l.b16 %v353
    %v658 = vunpack.c.l.b16 %v354
    %v659 = vunpack.c.h.b16 %v354
    %v660 = vunpack.c.l.b16 %v355
    %v661 = vunpack.c.l.b16 %v356
    %v662 = vunpack.c.h.b16 %v356
    %v663 = vunpack.c.l.b16 %v357
    %v664 = vunpack.c.l.b16 %v358
    %v665 = vunpack.c.h.b16 %v358
    %v666 = vunpack.c.l.b16 %v359
    %v667 = vunpack.c.l.b16 %v360
    %v668 = vunpack.c.h.b16 %v360
    %v669 = vunpack.c.l.b16 %v361
    %v670 = vunpack.c.l.b16 %v362
    %v671 = vunpack.c.h.b16 %v362
    %v672 = vunpack.c.l.b16 %v363
    %v673 = vunpack.c.l.b16 %v364
    %v674 = vunpack.c.h.b16 %v364
    %v675 = vunpack.c.l.b16 %v365
    %v676 = vunpack.c.l.b16 %v366
    %v677 = vunpack.c.h.b16 %v366
    %v678 = vunpack.c.l.b16 %v367
    %v679 = vunpack.c.l.b16 %v368
    %v680 = vunpack.c.h.b16 %v368
    %v681 = vunpack.c.l.b16 %v369
    %v682 = vunpack.c.l.b16 %v370
    %v683 = vunpack.c.h.b16 %v370
    %v684 = vunpack.c.l.b16 %v371
    %v685 = vunpack.c.l.b16 %v372
    %v686 = vunpack.c.h.b16 %v372
    %v687 = vunpack.c.l.b16 %v373
    %v688 = vunpack.c.l.b16 %v374
    %v689 = vunpack.c.h.b16 %v374
    %v690 = vunpack.c.l.b16 %v375
    %v691 = vunpack.c.l.b16 %v376
    %v692 = vunpack.c.h.b16 %v376
    %v693 = vunpack.c.l.b16 %v377
    %v694 = vunpack.c.l.b16 %v378
    %v695 = vunpack.c.h.b16 %v378
    %v696 = vunpack.c.l.b16 %v379
    %v697 = vunpack.c.l.b16 %v380
    %v698 = vunpack.c.h.b16 %v380
    %v699 = vunpack.c.l.b16 %v381
    %v700 = vunpack.c.l.b16 %v382
    %v701 = vunpack.c.h.b16 %v382
    %v702 = vunpack.c.l.b16 %v383
    %v703 = vunpack.c.l.b16 %v384
    %v704 = vunpack.c.h.b16 %v384
    %v705 = vunpack.c.l.b16 %v385
    %v706 = vpack.c.b16 %v517, %v514
    %v707 = vpack.c.b16 %v518, %v515
    %v708 = vpack.c.b16 %v519, %v516
    %v709 = vpack.c.b16 %v523, %v520
    %v710 = vpack.c.b16 %v524, %v521
    %v711 = vpack.c.b16 %v525, %v522
    %v712 = vpack.c.b16 %v529, %v526
    %v713 = vpack.c.b16 %v530, %v527
    %v714 = vpack.c.b16 %v531, %v528
    %v715 = vpack.c.b16 %v535, %v532
    %v716 = vpack.c.b16 %v536, %v533
    %v717 = vpack.c.b16 %v537, %v534
    %v718 = vpack.c.b16 %v541, %v538
    %v719 = vpack.c.b16 %v542, %v539
    %v720 = vpack.c.b16 %v543, %v540
    %v721 = vpack.c.b16 %v547, %v544
    %v722 = vpack.c.b16 %v548, %v545
    %v723 = vpack.c.b16 %v549, %v546
    %v724 = vpack.c.b16 %v553, %v550
    %v725 = vpack.c.b16 %v554, %v551
    %v726 = vpack.c.b16 %v555, %v552
    %v727 = vpack.c.b16 %v559, %v556
    %v728 = vpack.c.b16 %v560, %v557
    %v729 = vpack.c.b16 %v561, %v558
    %v730 = vpack.c.b16 %v565, %v562
    %v731 = vpack.c.b16 %v566, %v563
    %v732 = vpack.c.b16 %v567, %v564
    %v733 = vpack.c.b16 %v571, %v568
    %v734 = vpack.c.b16 %v572, %v569
    %v735 = vpack.c.b16 %v573, %v570
    %v736 = vpack.c.b16 %v577, %v574
    %v737 = vpack.c.b16 %v578, %v575
    %v738 = vpack.c.b16 %v579, %v576
    %v739 = vpack.c.b16 %v583, %v580
    %v740 = vpack.c.b16 %v584, %v581
    %v741 = vpack.c.b16 %v585, %v582
    %v742 = vpack.c.b16 %v589, %v586
    %v743 = vpack.c.b16 %v590, %v587
    %v744 = vpack.c.b16 %v591, %v588
    %v745 = vpack.c.b16 %v595, %v592
    %v746 = vpack.c.b16 %v596, %v593
    %v747 = vpack.c.b16 %v597, %v594
    %v748 = vpack.c.b16 %v601, %v598
    %v749 = vpack.c.b16 %v602, %v599
    %v750 = vpack.c.b16 %v603, %v600
    %v751 = vpack.c.b16 %v607, %v604
    %v752 = vpack.c.b16 %v608, %v605
    %v753 = vpack.c.b16 %v609, %v606
    %v754 = vpack.c.b16 %v613, %v610
    %v755 = vpack.c.b16 %v614, %v611
    %v756 = vpack.c.b16 %v615, %v612
    %v757 = vpack.c.b16 %v619, %v616
    %v758 = vpack.c.b16 %v620, %v617
    %v759 = vpack.c.b16 %v621, %v618
    %v760 = vpack.c.b16 %v625, %v622
    %v761 = vpack.c.b16 %v626, %v623
    %v762 = vpack.c.b16 %v627, %v624
    %v763 = vpack.c.b16 %v631, %v628
    %v764 = vpack.c.b16 %v632, %v629
    %v765 = vpack.c.b16 %v633, %v630
    %v766 = vpack.c.b16 %v637, %v634
    %v767 = vpack.c.b16 %v638, %v635
    %v768 = vpack.c.b16 %v639, %v636
    %v769 = vpack.c.b16 %v643, %v640
    %v770 = vpack.c.b16 %v644, %v641
    %v771 = vpack.c.b16 %v645, %v642
    %v772 = vpack.c.b16 %v649, %v646
    %v773 = vpack.c.b16 %v650, %v647
    %v774 = vpack.c.b16 %v651, %v648
    %v775 = vpack.c.b16 %v655, %v652
    %v776 = vpack.c.b16 %v656, %v653
    %v777 = vpack.c.b16 %v657, %v654
    %v778 = vpack.c.b16 %v661, %v658
    %v779 = vpack.c.b16 %v662, %v659
    %v780 = vpack.c.b16 %v663, %v660
    %v781 = vpack.c.b16 %v667, %v664
    %v782 = vpack.c.b16 %v668, %v665
    %v783 = vpack.c.b16 %v669, %v666
    %v784 = vpack.c.b16 %v673, %v670
    %v785 = vpack.c.b16 %v674, %v671
    %v786 = vpack.c.b16 %v675, %v672
    %v787 = vpack.c.b16 %v679, %v676
    %v788 = vpack.c.b16 %v680, %v677
    %v789 = vpack.c.b16 %v681, %v678
    %v790 = vpack.c.b16 %v685, %v682
    %v791 = vpack.c.b16 %v686, %v683
    %v792 = vpack.c.b16 %v687, %v684
    %v793 = vpack.c.b16 %v691, %v688
    %v794 = vpack.c.b16 %v692, %v689
    %v795 = vpack.c.b16 %v693, %v690
    %v796 = vpack.c.b16 %v697, %v694
    %v797 = vpack.c.b16 %v698, %v695
    %v798 = vpack.c.b16 %v699, %v696
    %v799 = vpack.c.b16 %v703, %v700
    %v800 = vpack.c.b16 %v704, %v701
    %v801 = vpack.c.b16 %v705, %v702
    %898 = vmatprep.subr.bf16.mxu0 %v707
    %899 = vmatpush1.bf16.msra.mxu0 %v706
    %900 = vmatprep.subr.bf16.mxu0 %v710
    %901 = vmatpush1.bf16.msra.mxu0 %v709
    %902 = vmatprep.subr.bf16.mxu0 %v713
    %903 = vmatpush1.bf16.msra.mxu0 %v712
    %904 = vmatprep.subr.bf16.mxu0 %v716
    %905 = vmatpush1.bf16.msra.mxu0 %v715
    %906 = vmatprep.subr.bf16.mxu0 %v719
    %907 = vmatpush1.bf16.msra.mxu0 %v718
    %908 = vmatprep.subr.bf16.mxu0 %v722
    %909 = vmatpush1.bf16.msra.mxu0 %v721
    %910 = vmatprep.subr.bf16.mxu0 %v725
    %911 = vmatpush1.bf16.msra.mxu0 %v724
    %912 = vmatprep.subr.bf16.mxu0 %v728
    %913 = vmatpush1.bf16.msra.mxu0 %v727
    %914 = vmatprep.subr.bf16.mxu0 %v731
    %915 = vmatpush1.bf16.msra.mxu0 %v730
    %916 = vmatprep.subr.bf16.mxu0 %v734
    %917 = vmatpush1.bf16.msra.mxu0 %v733
    %918 = vmatprep.subr.bf16.mxu0 %v737
    %919 = vmatpush1.bf16.msra.mxu0 %v736
    %920 = vmatprep.subr.bf16.mxu0 %v740
    %921 = vmatpush1.bf16.msra.mxu0 %v739
    %922 = vmatprep.subr.bf16.mxu0 %v743
    %923 = vmatpush1.bf16.msra.mxu0 %v742
    %924 = vmatprep.subr.bf16.mxu0 %v746
    %925 = vmatpush1.bf16.msra.mxu0 %v745
    %926 = vmatprep.subr.bf16.mxu0 %v749
    %927 = vmatpush1.bf16.msra.mxu0 %v748
    %928 = vmatprep.subr.bf16.mxu0 %v752
    %929 = vmatpush1.bf16.msra.mxu0 %v751
    %930 = vmatprep.mubr.bf16.mxu0 %v255
    %931 = vmatmul.mubr.bf16.gmra.mrb[0].mxu0 %v254
    %v932 = vpop.f32.mrb[0].mxu0
    %v933 = vadd.f32 0.0, %v932
    %v934 = vpop.f32.mrb[0].mxu0
    %v935 = vadd.f32 0.0, %v934
    %v936 = vpop.f32.mrb[0].mxu0
    %v937 = vpop.f32.mrb[0].mxu0
    %938 = vdwg.mxu0
    %939 = vmatprep.subr.bf16.mxu0 %v755
    %940 = vmatpush1.bf16.msra.mxu0 %v754
    %941 = vmatprep.subr.bf16.mxu0 %v758
    %942 = vmatpush1.bf16.msra.mxu0 %v757
    %943 = vmatprep.subr.bf16.mxu0 %v761
    %944 = vmatpush1.bf16.msra.mxu0 %v760
    %945 = vmatprep.subr.bf16.mxu0 %v764
    %946 = vmatpush1.bf16.msra.mxu0 %v763
    %947 = vmatprep.subr.bf16.mxu0 %v767
    %948 = vmatpush1.bf16.msra.mxu0 %v766
    %949 = vmatprep.subr.bf16.mxu0 %v770
    %950 = vmatpush1.bf16.msra.mxu0 %v769
    %951 = vmatprep.subr.bf16.mxu0 %v773
    %952 = vmatpush1.bf16.msra.mxu0 %v772
    %953 = vmatprep.subr.bf16.mxu0 %v776
    %954 = vmatpush1.bf16.msra.mxu0 %v775
    %955 = vmatprep.subr.bf16.mxu0 %v779
    %956 = vmatpush1.bf16.msra.mxu0 %v778
    %957 = vmatprep.subr.bf16.mxu0 %v782
    %958 = vmatpush1.bf16.msra.mxu0 %v781
    %959 = vmatprep.subr.bf16.mxu0 %v785
    %960 = vmatpush1.bf16.msra.mxu0 %v784
    %961 = vmatprep.subr.bf16.mxu0 %v788
    %962 = vmatpush1.bf16.msra.mxu0 %v787
    %963 = vmatprep.subr.bf16.mxu0 %v791
    %964 = vmatpush1.bf16.msra.mxu0 %v790
    %965 = vmatprep.subr.bf16.mxu0 %v794
    %966 = vmatpush1.bf16.msra.mxu0 %v793
    %967 = vmatprep.subr.bf16.mxu0 %v797
    %968 = vmatpush1.bf16.msra.mxu0 %v796
    %969 = vmatprep.subr.bf16.mxu0 %v800
    %970 = vmatpush1.bf16.msra.mxu0 %v799
    %971 = vmatprep.mubr.bf16.mxu0 %v257
    %972 = vmatmul.mubr.bf16.gmra.mrb[0].mxu0 %v256
    %v973 = vpop.f32.mrb[0].mxu0
    %v974 = vadd.f32 %v933, %v973
    %v975 = vpop.f32.mrb[0].mxu0
    %v976 = vadd.f32 %v935, %v975
    %v977 = vpop.f32.mrb[0].mxu0
    %v978 = vpop.f32.mrb[0].mxu0
    %979 = vdwg.mxu0
    %980 = vmatprep.subr.bf16.mxu0 0
    %981 = vmatpush1.bf16.msra.mxu0 %v708
    %982 = vmatprep.subr.bf16.mxu0 0
    %983 = vmatpush1.bf16.msra.mxu0 %v711
    %984 = vmatprep.subr.bf16.mxu0 0
    %985 = vmatpush1.bf16.msra.mxu0 %v714
    %986 = vmatprep.subr.bf16.mxu0 0
    %987 = vmatpush1.bf16.msra.mxu0 %v717
    %988 = vmatprep.subr.bf16.mxu0 0
    %989 = vmatpush1.bf16.msra.mxu0 %v720
    %990 = vmatprep.subr.bf16.mxu0 0
    %991 = vmatpush1.bf16.msra.mxu0 %v723
    %992 = vmatprep.subr.bf16.mxu0 0
    %993 = vmatpush1.bf16.msra.mxu0 %v726
    %994 = vmatprep.subr.bf16.mxu0 0
    %995 = vmatpush1.bf16.msra.mxu0 %v729
    %996 = vmatprep.subr.bf16.mxu0 0
    %997 = vmatpush1.bf16.msra.mxu0 %v732
    %998 = vmatprep.subr.bf16.mxu0 0
    %999 = vmatpush1.bf16.msra.mxu0 %v735
    %1000 = vmatprep.subr.bf16.mxu0 0
    %1001 = vmatpush1.bf16.msra.mxu0 %v738
    %1002 = vmatprep.subr.bf16.mxu0 0
    %1003 = vmatpush1.bf16.msra.mxu0 %v741
    %1004 = vmatprep.subr.bf16.mxu0 0
    %1005 = vmatpush1.bf16.msra.mxu0 %v744
    %1006 = vmatprep.subr.bf16.mxu0 0
    %1007 = vmatpush1.bf16.msra.mxu0 %v747
    %1008 = vmatprep.subr.bf16.mxu0 0
    %1009 = vmatpush1.bf16.msra.mxu0 %v750
    %1010 = vmatprep.subr.bf16.mxu0 0
    %1011 = vmatpush1.bf16.msra.mxu0 %v753
    %1012 = vmatprep.mubr.bf16.mxu0 %v255
    %1013 = vmatmul.mubr.bf16.gmra.mrb[0].mxu0 %v254
    %v1014 = vpop.f32.mrb[0].mxu0
    %v1015 = vadd.f32 0.0, %v1014
    %v1016 = vpop.f32.mrb[0].mxu0
    %v1017 = vpop.f32.mrb[0].mxu0
    %v1018 = vpop.f32.mrb[0].mxu0
    %1019 = vdwg.mxu0
    %1020 = vmatprep.subr.bf16.mxu0 0
    %1021 = vmatpush1.bf16.msra.mxu0 %v756
    %1022 = vmatprep.subr.bf16.mxu0 0
    %1023 = vmatpush1.bf16.msra.mxu0 %v759
    %1024 = vmatprep.subr.bf16.mxu0 0
    %1025 = vmatpush1.bf16.msra.mxu0 %v762
    %1026 = vmatprep.subr.bf16.mxu0 0
    %1027 = vmatpush1.bf16.msra.mxu0 %v765
    %1028 = vmatprep.subr.bf16.mxu0 0
    %1029 = vmatpush1.bf16.msra.mxu0 %v768
    %1030 = vmatprep.subr.bf16.mxu0 0
    %1031 = vmatpush1.bf16.msra.mxu0 %v771
    %1032 = vmatprep.subr.bf16.mxu0 0
    %1033 = vmatpush1.bf16.msra.mxu0 %v774
    %1034 = vmatprep.subr.bf16.mxu0 0
    %1035 = vmatpush1.bf16.msra.mxu0 %v777
    %1036 = vmatprep.subr.bf16.mxu0 0
    %1037 = vmatpush1.bf16.msra.mxu0 %v780
    %1038 = vmatprep.subr.bf16.mxu0 0
    %1039 = vmatpush1.bf16.msra.mxu0 %v783
    %1040 = vmatprep.subr.bf16.mxu0 0
    %1041 = vmatpush1.bf16.msra.mxu0 %v786
    %1042 = vmatprep.subr.bf16.mxu0 0
    %1043 = vmatpush1.bf16.msra.mxu0 %v789
    %1044 = vmatprep.subr.bf16.mxu0 0
    %1045 = vmatpush1.bf16.msra.mxu0 %v792
    %1046 = vmatprep.subr.bf16.mxu0 0
    %1047 = vmatpush1.bf16.msra.mxu0 %v795
    %1048 = vmatprep.subr.bf16.mxu0 0
    %1049 = vmatpush1.bf16.msra.mxu0 %v798
    %1050 = vmatprep.subr.bf16.mxu0 0
    %1051 = vmatpush1.bf16.msra.mxu0 %v801
    %1052 = vmatprep.mubr.bf16.mxu0 %v257
    %1053 = vmatmul.mubr.bf16.gmra.mrb[0].mxu0 %v256
    %v1054 = vpop.f32.mrb[0].mxu0
    %v1055 = vadd.f32 %v1015, %v1054
    %v1056 = vpop.f32.mrb[0].mxu0
    %v1057 = vpop.f32.mrb[0].mxu0
    %v1058 = vpop.f32.mrb[0].mxu0
    %1059 = vdwg.mxu0
    %v1060 = vpack.c.bf16 %v974, %v974
    %v1061 = vpack.c.bf16 %v976, %v976
    %v1062 = vpack.c.bf16 %v1055, %v1055
    %v1063 = vld [vmem:[%s4] sm:$0x7]
    %v1066 = vunpack.c.l.s4 1966171168
    %v1067 = vunpack.c.0.s8 %v1066
    %v1068 = vlaneseq
    %v1069 = vshrl.u32 %v1068, 7
    %v1070 = vsub.s32 %v1067, %v1069
    %v1071 = vrot.slane %v1063, %v1070
    %v1072 = vcombine.high %v1071, %v1071
    %v1074 = vunpack.c.l.s4 1966171168
    %v1075 = vunpack.c.0.s8 %v1074
    %v1076 = vlaneseq
    %v1077 = vshrl.u32 %v1076, 7
    %v1078 = vsub.s32 %v1075, %v1077
    %v1079 = vrot.slane %v1071, %v1078
    %v1081 = vunpack.c.l.s4 1966171168
    %v1082 = vunpack.c.0.s8 %v1081
    %v1083 = vlaneseq
    %v1084 = vshrl.u32 %v1083, 7
    %v1085 = vsub.s32 %v1082, %v1084
    %v1086 = vrot.slane %v1072, %v1085
    %v1087 = vcombine.high %v1079, %v1079
    %v1089 = vpack.i.b16 %v1079, %v1079
    %v1091 = vlaneseq
    %v1092 = vshrl.u32 %v1091, 7
    %v1093 = vsub.s32 0, %v1092
    %v1094 = vrot.slane %v1089, %v1093
    %v1096 = vpack.i.b16 %v1086, %v1086
    %v1098 = vlaneseq
    %v1099 = vshrl.u32 %v1098, 7
    %v1100 = vsub.s32 0, %v1099
    %v1101 = vrot.slane %v1096, %v1100
    %v1103 = vpack.i.b16 %v1087, %v1087
    %v1105 = vlaneseq
    %v1106 = vshrl.u32 %v1105, 7
    %v1107 = vsub.s32 0, %v1106
    %v1108 = vrot.slane %v1103, %v1107
    %v1109 = vadd.bf16 %v1060, %v1094
    %v1110 = vadd.bf16 %v1061, %v1101
    %v1111 = vadd.bf16 %v1062, %v1108
    %v1112 = vmax.bf16 %v1109, 0
    %v1113 = vmax.bf16 %v1110, 0
    %v1114 = vmax.bf16 %v1111, 0
    %v1115 = vld [vmem:[#allocation8] sm:$0xf]
    %v1116 = vld [vmem:[#allocation8 + $0x4] sm:$0xf]
    %v1117 = vld [vmem:[#allocation8 + $0x8] sm:$0xf]
    %v1118 = vld [vmem:[#allocation8 + $0xc] sm:$0xf]
    %v1119 = vld [vmem:[#allocation8 + $0x10] sm:$0xf]
    %v1120 = vld [vmem:[#allocation8 + $0x14] sm:$0xf]
    %v1121 = vld [vmem:[#allocation8 + $0x18] sm:$0xf]
    %v1122 = vld [vmem:[#allocation8 + $0x1c] sm:$0xf]
    %v1123 = vld [vmem:[#allocation8 + $0x20] sm:$0xf]
    %v1124 = vld [vmem:[#allocation8 + $0x24] sm:$0xf]
    %v1125 = vld [vmem:[#allocation8 + $0x28] sm:$0xf]
    %v1126 = vld [vmem:[#allocation8 + $0x2c] sm:$0xf]
    %v1127 = vld [vmem:[#allocation8 + $0x30] sm:$0xf]
    %v1128 = vld [vmem:[#allocation8 + $0x34] sm:$0xf]
    %v1129 = vld [vmem:[#allocation8 + $0x38] sm:$0xf]
    %v1130 = vld [vmem:[#allocation8 + $0x3c] sm:$0xf]
    %v1131 = vld [vmem:[#allocation8 + $0x40] sm:$0xf]
    %v1132 = vld [vmem:[#allocation8 + $0x44] sm:$0xf]
    %v1133 = vld [vmem:[#allocation8 + $0x48] sm:$0xf]
    %v1134 = vld [vmem:[#allocation8 + $0x4c] sm:$0xf]
    %v1135 = vld [vmem:[#allocation8 + $0x50] sm:$0xf]
    %v1136 = vld [vmem:[#allocation8 + $0x54] sm:$0xf]
    %v1137 = vld [vmem:[#allocation8 + $0x58] sm:$0xf]
    %v1138 = vld [vmem:[#allocation8 + $0x5c] sm:$0xf]
    %v1139 = vld [vmem:[#allocation8 + $0x60] sm:$0xf]
    %v1140 = vld [vmem:[#allocation8 + $0x64] sm:$0xf]
    %v1141 = vld [vmem:[#allocation8 + $0x68] sm:$0xf]
    %v1142 = vld [vmem:[#allocation8 + $0x6c] sm:$0xf]
    %v1143 = vld [vmem:[#allocation8 + $0x70] sm:$0xf]
    %v1144 = vld [vmem:[#allocation8 + $0x74] sm:$0xf]
    %v1145 = vld [vmem:[#allocation8 + $0x78] sm:$0xf]
    %v1146 = vld [vmem:[#allocation8 + $0x7c] sm:$0xf]
    %v1147 = vld [vmem:[#allocation8 + $0x80] sm:$0xf]
    %v1148 = vld [vmem:[#allocation8 + $0x84] sm:$0xf]
    %v1149 = vld [vmem:[#allocation8 + $0x88] sm:$0xf]
    %v1150 = vld [vmem:[#allocation8 + $0x8c] sm:$0xf]
    %v1151 = vld [vmem:[#allocation8 + $0x90] sm:$0xf]
    %v1152 = vld [vmem:[#allocation8 + $0x94] sm:$0xf]
    %v1153 = vld [vmem:[#allocation8 + $0x98] sm:$0xf]
    %v1154 = vld [vmem:[#allocation8 + $0x9c] sm:$0xf]
    %v1155 = vld [vmem:[#allocation8 + $0xa0] sm:$0xf]
    %v1156 = vld [vmem:[#allocation8 + $0xa4] sm:$0xf]
    %v1157 = vld [vmem:[#allocation8 + $0xa8] sm:$0xf]
    %v1158 = vld [vmem:[#allocation8 + $0xac] sm:$0xf]
    %v1159 = vld [vmem:[#allocation8 + $0xb0] sm:$0xf]
    %v1160 = vld [vmem:[#allocation8 + $0xb4] sm:$0xf]
    %v1161 = vld [vmem:[#allocation8 + $0xb8] sm:$0xf]
    %v1162 = vld [vmem:[#allocation8 + $0xbc] sm:$0xf]
    %v1163 = vld [vmem:[%s6] sm:$0x1]
    %v1165 = vlaneseq
    %v1166 = vshrl.u32 %v1165, 7
    %v1167 = vsub.s32 0, %v1166
    %v1168 = vrot.slane %v1163, %v1167
    %v1218 = vunpack.c.l.b16 %v1115
    %v1219 = vunpack.c.l.b16 %v1116
    %v1220 = vunpack.c.l.b16 %v1117
    %v1221 = vunpack.c.l.b16 %v1118
    %v1222 = vunpack.c.l.b16 %v1119
    %v1223 = vunpack.c.l.b16 %v1120
    %v1224 = vunpack.c.l.b16 %v1121
    %v1225 = vunpack.c.l.b16 %v1122
    %v1226 = vunpack.c.l.b16 %v1123
    %v1227 = vunpack.c.l.b16 %v1124
    %v1228 = vunpack.c.l.b16 %v1125
    %v1229 = vunpack.c.l.b16 %v1126
    %v1230 = vunpack.c.l.b16 %v1127
    %v1231 = vunpack.c.l.b16 %v1128
    %v1232 = vunpack.c.l.b16 %v1129
    %v1233 = vunpack.c.l.b16 %v1130
    %v1234 = vunpack.c.l.b16 %v1131
    %v1235 = vunpack.c.l.b16 %v1132
    %v1236 = vunpack.c.l.b16 %v1133
    %v1237 = vunpack.c.l.b16 %v1134
    %v1238 = vunpack.c.l.b16 %v1135
    %v1239 = vunpack.c.l.b16 %v1136
    %v1240 = vunpack.c.l.b16 %v1137
    %v1241 = vunpack.c.l.b16 %v1138
    %v1242 = vunpack.c.l.b16 %v1139
    %v1243 = vunpack.c.l.b16 %v1140
    %v1244 = vunpack.c.l.b16 %v1141
    %v1245 = vunpack.c.l.b16 %v1142
    %v1246 = vunpack.c.l.b16 %v1143
    %v1247 = vunpack.c.l.b16 %v1144
    %v1248 = vunpack.c.l.b16 %v1145
    %v1249 = vunpack.c.l.b16 %v1146
    %v1250 = vunpack.c.l.b16 %v1147
    %v1251 = vunpack.c.l.b16 %v1148
    %v1252 = vunpack.c.l.b16 %v1149
    %v1253 = vunpack.c.l.b16 %v1150
    %v1254 = vunpack.c.l.b16 %v1151
    %v1255 = vunpack.c.l.b16 %v1152
    %v1256 = vunpack.c.l.b16 %v1153
    %v1257 = vunpack.c.l.b16 %v1154
    %v1258 = vunpack.c.l.b16 %v1155
    %v1259 = vunpack.c.l.b16 %v1156
    %v1260 = vunpack.c.l.b16 %v1157
    %v1261 = vunpack.c.l.b16 %v1158
    %v1262 = vunpack.c.l.b16 %v1159
    %v1263 = vunpack.c.l.b16 %v1160
    %v1264 = vunpack.c.l.b16 %v1161
    %v1265 = vunpack.c.l.b16 %v1162
    %v1266 = vpack.c.b16 %v1219, %v1218
    %v1267 = vpack.c.b16 %v1221, %v1220
    %v1268 = vpack.c.b16 %v1223, %v1222
    %v1269 = vpack.c.b16 %v1225, %v1224
    %v1270 = vpack.c.b16 %v1227, %v1226
    %v1271 = vpack.c.b16 %v1229, %v1228
    %v1272 = vpack.c.b16 %v1231, %v1230
    %v1273 = vpack.c.b16 %v1233, %v1232
    %v1274 = vpack.c.b16 %v1235, %v1234
    %v1275 = vpack.c.b16 %v1237, %v1236
    %v1276 = vpack.c.b16 %v1239, %v1238
    %v1277 = vpack.c.b16 %v1241, %v1240
    %v1278 = vpack.c.b16 %v1243, %v1242
    %v1279 = vpack.c.b16 %v1245, %v1244
    %v1280 = vpack.c.b16 %v1247, %v1246
    %v1281 = vpack.c.b16 %v1249, %v1248
    %v1282 = vpack.c.b16 %v1251, %v1250
    %v1283 = vpack.c.b16 %v1253, %v1252
    %v1284 = vpack.c.b16 %v1255, %v1254
    %v1285 = vpack.c.b16 %v1257, %v1256
    %v1286 = vpack.c.b16 %v1259, %v1258
    %v1287 = vpack.c.b16 %v1261, %v1260
    %v1288 = vpack.c.b16 %v1263, %v1262
    %v1289 = vpack.c.b16 %v1265, %v1264
    %1314 = vmatprep.subr.bf16.mxu0 0
    %1315 = vmatpush1.bf16.msra.mxu0 %v1266
    %1316 = vmatprep.subr.bf16.mxu0 0
    %1317 = vmatpush1.bf16.msra.mxu0 %v1267
    %1318 = vmatprep.subr.bf16.mxu0 0
    %1319 = vmatpush1.bf16.msra.mxu0 %v1268
    %1320 = vmatprep.subr.bf16.mxu0 0
    %1321 = vmatpush1.bf16.msra.mxu0 %v1269
    %1322 = vmatprep.subr.bf16.mxu0 0
    %1323 = vmatpush1.bf16.msra.mxu0 %v1270
    %1324 = vmatprep.subr.bf16.mxu0 0
    %1325 = vmatpush1.bf16.msra.mxu0 %v1271
    %1326 = vmatprep.subr.bf16.mxu0 0
    %1327 = vmatpush1.bf16.msra.mxu0 %v1272
    %1328 = vmatprep.subr.bf16.mxu0 0
    %1329 = vmatpush1.bf16.msra.mxu0 %v1273
    %1330 = vmatprep.subr.bf16.mxu0 0
    %1331 = vmatpush1.bf16.msra.mxu0 %v1274
    %1332 = vmatprep.subr.bf16.mxu0 0
    %1333 = vmatpush1.bf16.msra.mxu0 %v1275
    %1334 = vmatprep.subr.bf16.mxu0 0
    %1335 = vmatpush1.bf16.msra.mxu0 %v1276
    %1336 = vmatprep.subr.bf16.mxu0 0
    %1337 = vmatpush1.bf16.msra.mxu0 %v1277
    %1338 = vmatprep.subr.bf16.mxu0 0
    %1339 = vmatpush1.bf16.msra.mxu0 %v1278
    %1340 = vmatprep.subr.bf16.mxu0 0
    %1341 = vmatpush1.bf16.msra.mxu0 %v1279
    %1342 = vmatprep.subr.bf16.mxu0 0
    %1343 = vmatpush1.bf16.msra.mxu0 %v1280
    %1344 = vmatprep.subr.bf16.mxu0 0
    %1345 = vmatpush1.bf16.msra.mxu0 %v1281
    %1346 = vmatprep.mubr.bf16.mxu0 %v1113
    %1347 = vmatmul.mubr.bf16.gmra.mrb[0].mxu0 %v1112
    %v1348 = vpop.f32.mrb[0].mxu0
    %v1349 = vadd.f32 %v1168, %v1348
    %v1350 = vpop.f32.mrb[0].mxu0
    %v1351 = vpop.f32.mrb[0].mxu0
    %v1352 = vpop.f32.mrb[0].mxu0
    %1353 = vdwg.mxu0
    %1354 = vmatprep.subr.bf16.mxu0 0
    %1355 = vmatpush1.bf16.msra.mxu0 %v1282
    %1356 = vmatprep.subr.bf16.mxu0 0
    %1357 = vmatpush1.bf16.msra.mxu0 %v1283
    %1358 = vmatprep.subr.bf16.mxu0 0
    %1359 = vmatpush1.bf16.msra.mxu0 %v1284
    %1360 = vmatprep.subr.bf16.mxu0 0
    %1361 = vmatpush1.bf16.msra.mxu0 %v1285
    %1362 = vmatprep.subr.bf16.mxu0 0
    %1363 = vmatpush1.bf16.msra.mxu0 %v1286
    %1364 = vmatprep.subr.bf16.mxu0 0
    %1365 = vmatpush1.bf16.msra.mxu0 %v1287
    %1366 = vmatprep.subr.bf16.mxu0 0
    %1367 = vmatpush1.bf16.msra.mxu0 %v1288
    %1368 = vmatprep.subr.bf16.mxu0 0
    %1369 = vmatpush1.bf16.msra.mxu0 %v1289
    %1370 = vmatprep.subr.bf16.mxu0 0
    %1371 = vmatpush1.bf16.msra.mxu0 0
    %1372 = vmatprep.subr.bf16.mxu0 0
    %1373 = vmatpush1.bf16.msra.mxu0 0
    %1374 = vmatprep.subr.bf16.mxu0 0
    %1375 = vmatpush1.bf16.msra.mxu0 0
    %1376 = vmatprep.subr.bf16.mxu0 0
    %1377 = vmatpush1.bf16.msra.mxu0 0
    %1378 = vmatprep.subr.bf16.mxu0 0
    %1379 = vmatpush1.bf16.msra.mxu0 0
    %1380 = vmatprep.subr.bf16.mxu0 0
    %1381 = vmatpush1.bf16.msra.mxu0 0
    %1382 = vmatprep.subr.bf16.mxu0 0
    %1383 = vmatpush1.bf16.msra.mxu0 0
    %1384 = vmatprep.subr.bf16.mxu0 0
    %1385 = vmatpush1.bf16.msra.mxu0 0
    %1386 = vmatprep.mubr.bf16.mxu0 0
    %1387 = vmatmul.mubr.bf16.gmra.mrb[0].mxu0 %v1114
    %v1388 = vpop.f32.mrb[0].mxu0
    %v1389 = vadd.f32 %v1349, %v1388
    %v1390 = vpop.f32.mrb[0].mxu0
    %v1391 = vpop.f32.mrb[0].mxu0
    %v1392 = vpop.f32.mrb[0].mxu0
    %1393 = vdwg.mxu0
    %v1394 = vtanh.pop %v1389
    %1395 = vst [vmem:[#allocation10] sm:$0xff] %v1394
    // Predicated region
    $region46: #{tpu_custom_call.1} parent=1 // pred_check
      _
    $region47: #{tpu_custom_call.1} parent=1 // pred_check_branch
      %1397 = sbr.rel (0) target = $region49
    $region48: #{tpu_custom_call.1} parent=1 // pred_region
      %s1399 = ssub.s32 128, 128
      %1400 = vsyncadd [#allocation4], %s1399
      %s1402 = sshll.u32 [#allocation10], 4
      %s1403 = int_to_ptr.vmem [resolvable:$true] %s1402
      %1405 = dma.vmem_to_hbm [thread:$0]  %s1403, 128, %s7, [#allocation4]
    $region49: #{tpu_custom_call.1} parent=1 // pred_fallthru
      _
    // Predicated region
    $region50: #{tpu_custom_call.1} parent=1 // pred_check
      _
    $region51: #{tpu_custom_call.1} parent=1 // pred_check_branch
      %1407 = sbr.rel (0) target = $region53
    $region52: #{tpu_custom_call.1} parent=1 // pred_region
      %1408 = dma.done [#allocation4], 128
    $region53: #{tpu_custom_call.1} parent=1 // pred_fallthru
      _
    %1409 = vsyncpa [#allocation3], 1
    %1410 = vsyncpa [#allocation6], 1
    %1411 = vsyncpa [#allocation9], 1
    %1412 = vsyncpa [#allocation4], 1

</llo_original>
